<compile_context>
chip_gen: v7x
topology: tpu7x:2x2x1
jax: 0.10.0
libtpu: 0.0.40
codegen_flags: <defaults>
</compile_context>

<pallas_src>
import functools
import math

import jax
import jax.numpy as jnp
from jax.experimental import pallas as pl
from jax.experimental.pallas import tpu as pltpu

LANE = 128       # every feature dim is zero-padded to the 128-lane vreg width
NEG = 1e30       # additive mask value for non-neighbors
TCHUNK = 8       # target-row chunk for the masked-max aggregation

# packed-weight row offsets inside the (W_ROWS, 128) bf16 slab
ENC_W1_OFF = 0 * LANE
ENC_WZ_OFF = 1 * LANE
DEC_W1_OFF = 2 * LANE
DEC_WX_OFF = 3 * LANE
AGG_W0_OFF = 4 * LANE
AGG_W1_OFF = 5 * LANE
FC_W0_OFF = 6 * LANE          # 256 rows: [W_self ; W_agg]
FC_W1_OFF = 8 * LANE          # 256 rows: [W_self ; W_agg]
W_ROWS = 10 * LANE

# packed (1, 128) vector row indices inside the (16, 128) f32 slab
ENC_B1, ENC_G1, ENC_BE1, ENC_BZ = 0, 1, 2, 3
DEC_B1, DEC_G1, DEC_BE1, DEC_BX = 4, 5, 6, 7
AGG_B0, AGG_B1, FC_B0, FC_B1 = 8, 9, 10, 11
V_ROWS = 16


# ----------------------------- fused Pallas kernel ---------------------------

def _fused_kernel(
    # inputs (5)
    x_ref, x1_ref, adj_ref, w_ref, v_ref,
    # outputs (4)
    ae_z_ref, gs_z_ref, z_ref, xbar_ref,
    # scratch
    agg_scratch,
    *, beta, de_act, n_nodes,
):
    f32 = jnp.float32
    bf16 = jnp.bfloat16

    def wslab(off, rows=LANE):
        # static row slice of the packed bf16 weight slab (zero-cost ref view)
        return w_ref[off:off + rows, :]

    def vrow(i):
        # static (1, 128) f32 bias / gamma / beta row
        return v_ref[i:i + 1, :]

    def dot_w(a, off, rows=LANE):
        # bf16 operands on the MXU, f32 accumulation
        return jnp.dot(a.astype(bf16), wslab(off, rows),
                       preferred_element_type=f32)

    def linear(a, w_off, b_idx):
        return dot_w(a, w_off) + vrow(b_idx)

    def linear_bn_relu(a, w_off, b_idx, g_idx, be_idx):
        # Linear -> BatchNorm1d (training-mode full-batch stats, eps=1e-5,
        # biased variance, all in f32) -> ReLU. The row (batch) dim is a single
        # block so these are exact full-batch statistics.
        y = linear(a, w_off, b_idx)
        mean = jnp.mean(y, axis=0, keepdims=True)
        var = jnp.mean((y - mean) ** 2, axis=0, keepdims=True)
        yhat = (y - mean) * jax.lax.rsqrt(var + 1e-5)
        return jnp.maximum(yhat * vrow(g_idx) + vrow(be_idx), 0.0)

    def maxpool_agg(feat, agg_w_off, agg_b_idx):
        # MaxPoolAggregator: h = relu(fc1(features)); agg[i] = max_{j in N(i)} h[j]
        # Chunked over 8 target rows so the (8, S, 128) broadcast stays
        # register-resident (no full (T, S, 128) intermediate / vreg spills).
        h = jnp.maximum(linear(feat, agg_w_off, agg_b_idx), 0.0)   # (S, 128) f32

        @pl.loop(0, n_nodes // TCHUNK)
        def _(c):
            r = pl.multiple_of(c * TCHUNK, TCHUNK)
            a = adj_ref[pl.ds(r, TCHUNK), :]                       # (8, S) 0/1 f32
            bias = (a - 1.0) * NEG                                 # 0 or -1e30
            masked = h[None, :, :] + bias[:, :, None]              # (8, S, 128)
            agg = jnp.max(masked, axis=1)                          # (8, 128)
            # h >= 0, so clamping at zero removes the -1e30 bias for isolated
            # nodes (matching the reference zeros init), no-op otherwise.
            agg_scratch[pl.ds(r, TCHUNK), :] = jnp.maximum(agg, 0.0)

        return agg_scratch[...]                                    # (T, 128) f32

    # ---------------- GraphSAGE branch (2 layers, MaxPoolAggregator) --------
    out0 = x_ref[...]                                              # bf16 (N, 128)
    agg0 = maxpool_agg(out0, AGG_W0_OFF, AGG_B0)
    # cat([out, agg], 1) @ W  ==  [out | agg] @ [W_self ; W_agg] : one K=256 dot
    cat0 = jnp.concatenate([out0, agg0.astype(bf16)], axis=-1)     # (N, 256) bf16
    out1 = jnp.maximum(
        jnp.dot(cat0, wslab(FC_W0_OFF, 2 * LANE), preferred_element_type=f32)
        + vrow(FC_B0), 0.0)                                        # ReLU (+dropout p=0)

    agg1 = maxpool_agg(out1, AGG_W1_OFF, AGG_B1)
    cat1 = jnp.concatenate([out1.astype(bf16), agg1.astype(bf16)], axis=-1)
    gs_z = (jnp.dot(cat1, wslab(FC_W1_OFF, 2 * LANE), preferred_element_type=f32)
            + vrow(FC_B1))                                         # last layer: no act

    # ---------------- AE encoder on x1 ----------------
    h_enc = linear_bn_relu(x1_ref[...], ENC_W1_OFF, ENC_B1, ENC_G1, ENC_BE1)
    ae_z = linear(h_enc, ENC_WZ_OFF, ENC_BZ)

    # ---------------- combine + decoder (fused epilogue) ----------------
    z = (1.0 - beta) * ae_z + beta * gs_z
    h_dec = linear_bn_relu(z, DEC_W1_OFF, DEC_B1, DEC_G1, DEC_BE1)
    x_bar = linear(h_dec, DEC_WX_OFF, DEC_BX)
    if de_act == "sigmoid":
        x_bar = jax.nn.sigmoid(x_bar)
    elif de_act == "relu":
        x_bar = jnp.maximum(x_bar, 0.0)

    # lane-dense (N, 128) unmasked stores
    ae_z_ref[...] = ae_z
    gs_z_ref[...] = gs_z
    z_ref[...] = z
    xbar_ref[...] = x_bar


# ----------------------------- wrapper ----------------------------------------

def _vmem_spec():
    return pl.BlockSpec(memory_space=pltpu.MemorySpace.VMEM)


def _pad2(a, shape):
    return jnp.pad(a, [(0, t - s) for s, t in zip(a.shape, shape)])


def a_g_combination_forward(x, adj, sel_idx, params, beta, zdim, de_act="sigmoid"):
    n, d = x.shape
    assert n % TCHUNK == 0, "node count must be a multiple of 8 (pad the graph)"
    # x1 = x[[mappings[0][i] for i in node_layers[-1]], :]  (identity mappings here)
    x1 = x[sel_idx, :]
    # activations are matmul operands only -> ship them bf16 (halves input DMA)
    xp = _pad2(x.astype(jnp.float32), (n, LANE)).astype(jnp.bfloat16)
    x1p = _pad2(x1.astype(jnp.float32), (n, LANE)).astype(jnp.bfloat16)
    adj_f = adj.astype(jnp.float32)                     # raw (T, S) 0/1 mask

    kern = functools.partial(_fused_kernel, beta=float(beta), de_act=de_act,
                             n_nodes=n)
    outs = pl.pallas_call(
        kern,
        out_shape=tuple(jax.ShapeDtypeStruct((n, LANE), jnp.float32)
                        for _ in range(4)),
        in_specs=[_vmem_spec() for _ in range(5)],
        out_specs=tuple(_vmem_spec() for _ in range(4)),
        scratch_shapes=[pltpu.VMEM((n, LANE), jnp.float32)],   # shared agg buffer
        compiler_params=pltpu.CompilerParams(vmem_limit_bytes=32 * 1024 * 1024),
    )(xp, x1p, adj_f, params["w_pack"], params["v_pack"])

    ae_zp, gs_zp, zp, xbarp = outs
    ae_z = ae_zp[:, :zdim]
    gs_z = gs_zp[:, :zdim]
    z = zp[:, :zdim]
    x_bar = xbarp[:, :d]
    return [ae_z, gs_z, z], x_bar, x1


# ----------------------------- parameter init ---------------------------------

def _xavier_t(key, in_dim, out_dim):
    # torch nn.init.xavier_normal_ on a (out, in) weight; store transposed (in, out)
    std = math.sqrt(2.0 / (in_dim + out_dim))
    w = std * jax.random.normal(key, (out_dim, in_dim), dtype=jnp.float32)
    return w.T


def _pad_w(w):
    return _pad2(w, (LANE, LANE))


def _pad_v(v):
    return _pad2(v.reshape(1, -1).astype(jnp.float32), (1, LANE))


def make_params(key, d, h_ae, z, h_gs):
    """Weights are zero-padded to 128 lanes, stacked into one bf16 slab; all
    (1,128) bias/gamma/beta vectors are packed into one (16,128) f32 slab."""
    assert max(d, h_ae, z, h_gs) <= LANE
    ks = jax.random.split(key, 8)
    enc_w1 = _xavier_t(ks[0], d, h_ae)
    enc_wz = _xavier_t(ks[1], h_ae, z)
    dec_w1 = _xavier_t(ks[2], z, h_ae)
    dec_wx = _xavier_t(ks[3], h_ae, d)
    agg_w0 = _xavier_t(ks[4], d, d)
    agg_w1 = _xavier_t(ks[5], h_gs, h_gs)
    fc_w0 = _xavier_t(ks[6], 2 * d, h_gs)      # (2D, H_GS): split self/agg halves
    fc_w1 = _xavier_t(ks[7], 2 * h_gs, z)

    w_pack = jnp.concatenate([
        _pad_w(enc_w1), _pad_w(enc_wz), _pad_w(dec_w1), _pad_w(dec_wx),
        _pad_w(agg_w0), _pad_w(agg_w1),
        _pad_w(fc_w0[:d]), _pad_w(fc_w0[d:]),
        _pad_w(fc_w1[:h_gs]), _pad_w(fc_w1[h_gs:]),
    ], axis=0).astype(jnp.bfloat16)
    assert w_pack.shape == (W_ROWS, LANE)

    zeros = lambda k: jnp.zeros(k, jnp.float32)
    ones = lambda k: jnp.ones(k, jnp.float32)
    v_rows = [
        _pad_v(zeros(h_ae)),  # ENC_B1
        _pad_v(ones(h_ae)),   # ENC_G1
        _pad_v(zeros(h_ae)),  # ENC_BE1
        _pad_v(zeros(z)),     # ENC_BZ
        _pad_v(zeros(h_ae)),  # DEC_B1
        _pad_v(ones(h_ae)),   # DEC_G1
        _pad_v(zeros(h_ae)),  # DEC_BE1
        _pad_v(zeros(d)),     # DEC_BX
        _pad_v(zeros(d)),     # AGG_B0
        _pad_v(zeros(h_gs)),  # AGG_B1
        _pad_v(zeros(h_gs)),  # FC_B0
        _pad_v(zeros(z)),     # FC_B1
    ]
    v_rows += [_pad_v(zeros(1))] * (V_ROWS - len(v_rows))
    v_pack = jnp.concatenate(v_rows, axis=0)
    assert v_pack.shape == (V_ROWS, LANE)

    return dict(w_pack=w_pack, v_pack=v_pack)


# ----------------------------- main --------------------------------------------

if __name__ == "__main__":
    N = 16          # number of graph nodes
    D = 32          # feature dim (AEdims[0])
    H_AE = 16       # AEdims hidden
    Z = 8           # zdim (AEdims[-1] == GSdims[-1])
    H_GS = 16       # GSdims[0]
    BETA = 0.5

    key = jax.random.PRNGKey(0)
    k_params, k_x = jax.random.split(key)
    params = make_params(k_params, D, H_AE, Z, H_GS)

    x = jax.random.normal(k_x, (N, D), dtype=jnp.float32)

    # Deterministic ring graph: node i connected to i±1, i±2 (mod N).
    idx = jnp.arange(N)
    diff = (idx[:, None] - idx[None, :]) % N
    adj = ((diff == 1) | (diff == 2) | (diff == N - 1) | (diff == N - 2)).astype(jnp.float32)

    # node_layers[-1] = all nodes, mappings[0] = identity
    sel_idx = jnp.arange(N)

    fwd = jax.jit(lambda x_, adj_, sel_, p_: a_g_combination_forward(
        x_, adj_, sel_, p_, beta=BETA, zdim=Z, de_act="sigmoid"))

    final_z, x_bar, x1 = fwd(x, adj, sel_idx, params)
    jax.block_until_ready((final_z, x_bar, x1))

    assert final_z[0].shape == (N, Z) and final_z[1].shape == (N, Z) and final_z[2].shape == (N, Z)
    assert x_bar.shape == (N, D) and x1.shape == (N, D)
    assert bool(jnp.all(jnp.isfinite(x_bar)))
    assert bool(jnp.all(jnp.isfinite(final_z[2])))
    print("KERNEL_OK")
</pallas_src>

<mosaic_0001>
module attributes {stable_mosaic.version = 11 : i64} {
  func.func @_fused_kernel(%arg0: memref<16x128xbf16, #tpu.memory_space<vmem>>, %arg1: memref<16x128xbf16, #tpu.memory_space<vmem>>, %arg2: memref<16x16xf32, #tpu.memory_space<vmem>>, %arg3: memref<1280x128xbf16, #tpu.memory_space<vmem>>, %arg4: memref<16x128xf32, #tpu.memory_space<vmem>>, %arg5: memref<16x128xf32, #tpu.memory_space<vmem>>, %arg6: memref<16x128xf32, #tpu.memory_space<vmem>>, %arg7: memref<16x128xf32, #tpu.memory_space<vmem>>, %arg8: memref<16x128xf32, #tpu.memory_space<vmem>>, %arg9: memref<16x128xf32, #tpu.memory_space<vmem>>) attributes {dimension_semantics = [], scalar_prefetch = 0 : i64, scratch_operands = 1 : i64, tpu.core_type = #tpu.core_type<tc>} {
    %c0 = arith.constant 0 : index
    %c0_0 = arith.constant 0 : index
    %0 = vector.load %arg0[%c0, %c0_0] : memref<16x128xbf16, #tpu.memory_space<vmem>>, vector<16x128xbf16>
    %c512 = arith.constant 512 : index
    %c0_1 = arith.constant 0 : index
    %1 = vector.load %arg3[%c512, %c0_1] : memref<1280x128xbf16, #tpu.memory_space<vmem>>, vector<128x128xbf16>
    %cst = arith.constant dense<0.000000e+00> : vector<16x128xf32>
    %2 = tpu.matmul %0, %1, %cst {dimension_numbers = #tpu.dot_dimension_numbers<[1], [0], [0], [1], [0, 0, 1, 1], [], []>} : vector<16x128xbf16>, vector<128x128xbf16>, vector<16x128xf32> -> vector<16x128xf32>
    %c8 = arith.constant 8 : index
    %c0_2 = arith.constant 0 : index
    %3 = vector.load %arg4[%c8, %c0_2] : memref<16x128xf32, #tpu.memory_space<vmem>>, vector<1x128xf32>
    %4 = vector.broadcast %3 : vector<1x128xf32> to vector<16x128xf32>
    %5 = arith.addf %2, %4 : vector<16x128xf32>
    %cst_3 = arith.constant 0.000000e+00 : f32
    %6 = vector.broadcast %cst_3 : f32 to vector<16x128xf32>
    %7 = arith.maximumf %5, %6 : vector<16x128xf32>
    %c0_i32 = arith.constant 0 : i32
    %c2_i32 = arith.constant 2 : i32
    %8 = arith.addi %c0_i32, %c2_i32 : i32
    %c1_i32 = arith.constant 1 : i32
    scf.for %arg10 = %c0_i32 to %8 step %c1_i32  : i32 {
      %c1_i32_67 = arith.constant 1 : i32
      %127 = arith.muli %arg10, %c1_i32_67 : i32
      %c0_i32_68 = arith.constant 0 : i32
      %128 = arith.addi %c0_i32_68, %127 : i32
      %c8_i32 = arith.constant 8 : i32
      %129 = arith.muli %128, %c8_i32 : i32
      %130 = tpu.assume_multiple %129, 8 : i32
      %131 = arith.index_cast %130 : i32 to index
      %c0_69 = arith.constant 0 : index
      %132 = vector.load %arg2[%131, %c0_69] : memref<16x16xf32, #tpu.memory_space<vmem>>, vector<8x16xf32>
      %cst_70 = arith.constant 1.000000e+00 : f32
      %133 = vector.broadcast %cst_70 : f32 to vector<8x16xf32>
      %134 = arith.subf %132, %133 : vector<8x16xf32>
      %cst_71 = arith.constant 1.000000e+30 : f32
      %135 = vector.broadcast %cst_71 : f32 to vector<8x16xf32>
      %136 = arith.mulf %134, %135 : vector<8x16xf32>
      %137 = vector.shape_cast %7 : vector<16x128xf32> to vector<1x16x128xf32>
      %138 = vector.shape_cast %136 : vector<8x16xf32> to vector<8x16x1xf32>
      %139 = vector.broadcast %137 : vector<1x16x128xf32> to vector<8x16x128xf32>
      %140 = vector.broadcast %138 : vector<8x16x1xf32> to vector<8x16x128xf32>
      %141 = arith.addf %139, %140 : vector<8x16x128xf32>
      %cst_72 = arith.constant dense<0xFF800000> : vector<8x128xf32>
      %142 = vector.multi_reduction <maximumf>, %141, %cst_72 [1] : vector<8x16x128xf32> to vector<8x128xf32>
      %cst_73 = arith.constant 0.000000e+00 : f32
      %143 = vector.broadcast %cst_73 : f32 to vector<8x128xf32>
      %144 = arith.maximumf %142, %143 : vector<8x128xf32>
      %145 = arith.index_cast %130 : i32 to index
      %c0_74 = arith.constant 0 : index
      %146 = vector.load %arg9[%145, %c0_74] : memref<16x128xf32, #tpu.memory_space<vmem>>, vector<8x128xf32>
      tpu.vector_store %arg9[%145, %c0_74], %144 {strides = array<i32>} : memref<16x128xf32, #tpu.memory_space<vmem>>, vector<8x128xf32>,
    }
    %c2_i32_4 = arith.constant 2 : i32
    %c0_5 = arith.constant 0 : index
    %c0_6 = arith.constant 0 : index
    %9 = vector.load %arg9[%c0_5, %c0_6] : memref<16x128xf32, #tpu.memory_space<vmem>>, vector<16x128xf32>
    %10 = arith.truncf %9 : vector<16x128xf32> to vector<16x128xbf16>
    %11 = tpu.concatenate %0, %10 in 1 : vector<16x128xbf16>, vector<16x128xbf16> -> vector<16x256xbf16>
    %c768 = arith.constant 768 : index
    %c0_7 = arith.constant 0 : index
    %12 = vector.load %arg3[%c768, %c0_7] : memref<1280x128xbf16, #tpu.memory_space<vmem>>, vector<256x128xbf16>
    %cst_8 = arith.constant dense<0.000000e+00> : vector<16x128xf32>
    %13 = tpu.matmul %11, %12, %cst_8 {dimension_numbers = #tpu.dot_dimension_numbers<[1], [0], [0], [1], [0, 0, 1, 1], [], []>} : vector<16x256xbf16>, vector<256x128xbf16>, vector<16x128xf32> -> vector<16x128xf32>
    %c10 = arith.constant 10 : index
    %c0_9 = arith.constant 0 : index
    %14 = vector.load %arg4[%c10, %c0_9] : memref<16x128xf32, #tpu.memory_space<vmem>>, vector<1x128xf32>
    %15 = vector.broadcast %14 : vector<1x128xf32> to vector<16x128xf32>
    %16 = arith.addf %13, %15 : vector<16x128xf32>
    %cst_10 = arith.constant 0.000000e+00 : f32
    %17 = vector.broadcast %cst_10 : f32 to vector<16x128xf32>
    %18 = arith.maximumf %16, %17 : vector<16x128xf32>
    %19 = arith.truncf %18 : vector<16x128xf32> to vector<16x128xbf16>
    %c640 = arith.constant 640 : index
    %c0_11 = arith.constant 0 : index
    %20 = vector.load %arg3[%c640, %c0_11] : memref<1280x128xbf16, #tpu.memory_space<vmem>>, vector<128x128xbf16>
    %cst_12 = arith.constant dense<0.000000e+00> : vector<16x128xf32>
    %21 = tpu.matmul %19, %20, %cst_12 {dimension_numbers = #tpu.dot_dimension_numbers<[1], [0], [0], [1], [0, 0, 1, 1], [], []>} : vector<16x128xbf16>, vector<128x128xbf16>, vector<16x128xf32> -> vector<16x128xf32>
    %c9 = arith.constant 9 : index
    %c0_13 = arith.constant 0 : index
    %22 = vector.load %arg4[%c9, %c0_13] : memref<16x128xf32, #tpu.memory_space<vmem>>, vector<1x128xf32>
    %23 = vector.broadcast %22 : vector<1x128xf32> to vector<16x128xf32>
    %24 = arith.addf %21, %23 : vector<16x128xf32>
    %cst_14 = arith.constant 0.000000e+00 : f32
    %25 = vector.broadcast %cst_14 : f32 to vector<16x128xf32>
    %26 = arith.maximumf %24, %25 : vector<16x128xf32>
    %c0_i32_15 = arith.constant 0 : i32
    %c2_i32_16 = arith.constant 2 : i32
    %27 = arith.addi %c0_i32_15, %c2_i32_16 : i32
    %c1_i32_17 = arith.constant 1 : i32
    scf.for %arg10 = %c0_i32_15 to %27 step %c1_i32_17  : i32 {
      %c1_i32_67 = arith.constant 1 : i32
      %127 = arith.muli %arg10, %c1_i32_67 : i32
      %c0_i32_68 = arith.constant 0 : i32
      %128 = arith.addi %c0_i32_68, %127 : i32
      %c8_i32 = arith.constant 8 : i32
      %129 = arith.muli %128, %c8_i32 : i32
      %130 = tpu.assume_multiple %129, 8 : i32
      %131 = arith.index_cast %130 : i32 to index
      %c0_69 = arith.constant 0 : index
      %132 = vector.load %arg2[%131, %c0_69] : memref<16x16xf32, #tpu.memory_space<vmem>>, vector<8x16xf32>
      %cst_70 = arith.constant 1.000000e+00 : f32
      %133 = vector.broadcast %cst_70 : f32 to vector<8x16xf32>
      %134 = arith.subf %132, %133 : vector<8x16xf32>
      %cst_71 = arith.constant 1.000000e+30 : f32
      %135 = vector.broadcast %cst_71 : f32 to vector<8x16xf32>
      %136 = arith.mulf %134, %135 : vector<8x16xf32>
      %137 = vector.shape_cast %26 : vector<16x128xf32> to vector<1x16x128xf32>
      %138 = vector.shape_cast %136 : vector<8x16xf32> to vector<8x16x1xf32>
      %139 = vector.broadcast %137 : vector<1x16x128xf32> to vector<8x16x128xf32>
      %140 = vector.broadcast %138 : vector<8x16x1xf32> to vector<8x16x128xf32>
      %141 = arith.addf %139, %140 : vector<8x16x128xf32>
      %cst_72 = arith.constant dense<0xFF800000> : vector<8x128xf32>
      %142 = vector.multi_reduction <maximumf>, %141, %cst_72 [1] : vector<8x16x128xf32> to vector<8x128xf32>
      %cst_73 = arith.constant 0.000000e+00 : f32
      %143 = vector.broadcast %cst_73 : f32 to vector<8x128xf32>
      %144 = arith.maximumf %142, %143 : vector<8x128xf32>
      %145 = arith.index_cast %130 : i32 to index
      %c0_74 = arith.constant 0 : index
      %146 = vector.load %arg9[%145, %c0_74] : memref<16x128xf32, #tpu.memory_space<vmem>>, vector<8x128xf32>
      tpu.vector_store %arg9[%145, %c0_74], %144 {strides = array<i32>} : memref<16x128xf32, #tpu.memory_space<vmem>>, vector<8x128xf32>,
    }
    %c2_i32_18 = arith.constant 2 : i32
    %c0_19 = arith.constant 0 : index
    %c0_20 = arith.constant 0 : index
    %28 = vector.load %arg9[%c0_19, %c0_20] : memref<16x128xf32, #tpu.memory_space<vmem>>, vector<16x128xf32>
    %29 = arith.truncf %18 : vector<16x128xf32> to vector<16x128xbf16>
    %30 = arith.truncf %28 : vector<16x128xf32> to vector<16x128xbf16>
    %31 = tpu.concatenate %29, %30 in 1 : vector<16x128xbf16>, vector<16x128xbf16> -> vector<16x256xbf16>
    %c1024 = arith.constant 1024 : index
    %c0_21 = arith.constant 0 : index
    %32 = vector.load %arg3[%c1024, %c0_21] : memref<1280x128xbf16, #tpu.memory_space<vmem>>, vector<256x128xbf16>
    %cst_22 = arith.constant dense<0.000000e+00> : vector<16x128xf32>
    %33 = tpu.matmul %31, %32, %cst_22 {dimension_numbers = #tpu.dot_dimension_numbers<[1], [0], [0], [1], [0, 0, 1, 1], [], []>} : vector<16x256xbf16>, vector<256x128xbf16>, vector<16x128xf32> -> vector<16x128xf32>
    %c11 = arith.constant 11 : index
    %c0_23 = arith.constant 0 : index
    %34 = vector.load %arg4[%c11, %c0_23] : memref<16x128xf32, #tpu.memory_space<vmem>>, vector<1x128xf32>
    %35 = vector.broadcast %34 : vector<1x128xf32> to vector<16x128xf32>
    %36 = arith.addf %33, %35 : vector<16x128xf32>
    %c0_24 = arith.constant 0 : index
    %c0_25 = arith.constant 0 : index
    %37 = vector.load %arg1[%c0_24, %c0_25] : memref<16x128xbf16, #tpu.memory_space<vmem>>, vector<16x128xbf16>
    %c0_26 = arith.constant 0 : index
    %c0_27 = arith.constant 0 : index
    %38 = vector.load %arg3[%c0_26, %c0_27] : memref<1280x128xbf16, #tpu.memory_space<vmem>>, vector<128x128xbf16>
    %cst_28 = arith.constant dense<0.000000e+00> : vector<16x128xf32>
    %39 = tpu.matmul %37, %38, %cst_28 {dimension_numbers = #tpu.dot_dimension_numbers<[1], [0], [0], [1], [0, 0, 1, 1], [], []>} : vector<16x128xbf16>, vector<128x128xbf16>, vector<16x128xf32> -> vector<16x128xf32>
    %c0_29 = arith.constant 0 : index
    %c0_30 = arith.constant 0 : index
    %40 = vector.load %arg4[%c0_29, %c0_30] : memref<16x128xf32, #tpu.memory_space<vmem>>, vector<1x128xf32>
    %41 = vector.broadcast %40 : vector<1x128xf32> to vector<16x128xf32>
    %42 = arith.addf %39, %41 : vector<16x128xf32>
    %cst_31 = arith.constant dense<0.000000e+00> : vector<128xf32>
    %43 = vector.multi_reduction <add>, %42, %cst_31 [0] : vector<16x128xf32> to vector<128xf32>
    %44 = vector.shape_cast %43 : vector<128xf32> to vector<1x128xf32>
    %cst_32 = arith.constant 1.600000e+01 : f32
    %45 = vector.broadcast %cst_32 : f32 to vector<1x128xf32>
    %46 = arith.divf %44, %45 : vector<1x128xf32>
    %47 = vector.broadcast %46 : vector<1x128xf32> to vector<16x128xf32>
    %48 = arith.subf %42, %47 : vector<16x128xf32>
    %49 = arith.mulf %48, %48 : vector<16x128xf32>
    %cst_33 = arith.constant dense<0.000000e+00> : vector<128xf32>
    %50 = vector.multi_reduction <add>, %49, %cst_33 [0] : vector<16x128xf32> to vector<128xf32>
    %51 = vector.shape_cast %50 : vector<128xf32> to vector<1x128xf32>
    %cst_34 = arith.constant 1.600000e+01 : f32
    %52 = vector.broadcast %cst_34 : f32 to vector<1x128xf32>
    %53 = arith.divf %51, %52 : vector<1x128xf32>
    %54 = vector.broadcast %46 : vector<1x128xf32> to vector<16x128xf32>
    %55 = arith.subf %42, %54 : vector<16x128xf32>
    %cst_35 = arith.constant 9.99999974E-6 : f32
    %56 = vector.broadcast %cst_35 : f32 to vector<1x128xf32>
    %57 = arith.addf %53, %56 : vector<1x128xf32>
    %58 = math.rsqrt %57 : vector<1x128xf32>
    %59 = vector.broadcast %58 : vector<1x128xf32> to vector<16x128xf32>
    %60 = arith.mulf %55, %59 : vector<16x128xf32>
    %c1 = arith.constant 1 : index
    %c0_36 = arith.constant 0 : index
    %61 = vector.load %arg4[%c1, %c0_36] : memref<16x128xf32, #tpu.memory_space<vmem>>, vector<1x128xf32>
    %62 = vector.broadcast %61 : vector<1x128xf32> to vector<16x128xf32>
    %63 = arith.mulf %60, %62 : vector<16x128xf32>
    %c2 = arith.constant 2 : index
    %c0_37 = arith.constant 0 : index
    %64 = vector.load %arg4[%c2, %c0_37] : memref<16x128xf32, #tpu.memory_space<vmem>>, vector<1x128xf32>
    %65 = vector.broadcast %64 : vector<1x128xf32> to vector<16x128xf32>
    %66 = arith.addf %63, %65 : vector<16x128xf32>
    %cst_38 = arith.constant 0.000000e+00 : f32
    %67 = vector.broadcast %cst_38 : f32 to vector<16x128xf32>
    %68 = arith.maximumf %66, %67 : vector<16x128xf32>
    %69 = arith.truncf %68 : vector<16x128xf32> to vector<16x128xbf16>
    %c128 = arith.constant 128 : index
    %c0_39 = arith.constant 0 : index
    %70 = vector.load %arg3[%c128, %c0_39] : memref<1280x128xbf16, #tpu.memory_space<vmem>>, vector<128x128xbf16>
    %cst_40 = arith.constant dense<0.000000e+00> : vector<16x128xf32>
    %71 = tpu.matmul %69, %70, %cst_40 {dimension_numbers = #tpu.dot_dimension_numbers<[1], [0], [0], [1], [0, 0, 1, 1], [], []>} : vector<16x128xbf16>, vector<128x128xbf16>, vector<16x128xf32> -> vector<16x128xf32>
    %c3 = arith.constant 3 : index
    %c0_41 = arith.constant 0 : index
    %72 = vector.load %arg4[%c3, %c0_41] : memref<16x128xf32, #tpu.memory_space<vmem>>, vector<1x128xf32>
    %73 = vector.broadcast %72 : vector<1x128xf32> to vector<16x128xf32>
    %74 = arith.addf %71, %73 : vector<16x128xf32>
    %cst_42 = arith.constant 5.000000e-01 : f32
    %75 = vector.broadcast %cst_42 : f32 to vector<16x128xf32>
    %76 = arith.mulf %75, %74 : vector<16x128xf32>
    %cst_43 = arith.constant 5.000000e-01 : f32
    %77 = vector.broadcast %cst_43 : f32 to vector<16x128xf32>
    %78 = arith.mulf %77, %36 : vector<16x128xf32>
    %79 = arith.addf %76, %78 : vector<16x128xf32>
    %80 = arith.truncf %79 : vector<16x128xf32> to vector<16x128xbf16>
    %c256 = arith.constant 256 : index
    %c0_44 = arith.constant 0 : index
    %81 = vector.load %arg3[%c256, %c0_44] : memref<1280x128xbf16, #tpu.memory_space<vmem>>, vector<128x128xbf16>
    %cst_45 = arith.constant dense<0.000000e+00> : vector<16x128xf32>
    %82 = tpu.matmul %80, %81, %cst_45 {dimension_numbers = #tpu.dot_dimension_numbers<[1], [0], [0], [1], [0, 0, 1, 1], [], []>} : vector<16x128xbf16>, vector<128x128xbf16>, vector<16x128xf32> -> vector<16x128xf32>
    %c4 = arith.constant 4 : index
    %c0_46 = arith.constant 0 : index
    %83 = vector.load %arg4[%c4, %c0_46] : memref<16x128xf32, #tpu.memory_space<vmem>>, vector<1x128xf32>
    %84 = vector.broadcast %83 : vector<1x128xf32> to vector<16x128xf32>
    %85 = arith.addf %82, %84 : vector<16x128xf32>
    %cst_47 = arith.constant dense<0.000000e+00> : vector<128xf32>
    %86 = vector.multi_reduction <add>, %85, %cst_47 [0] : vector<16x128xf32> to vector<128xf32>
    %87 = vector.shape_cast %86 : vector<128xf32> to vector<1x128xf32>
    %cst_48 = arith.constant 1.600000e+01 : f32
    %88 = vector.broadcast %cst_48 : f32 to vector<1x128xf32>
    %89 = arith.divf %87, %88 : vector<1x128xf32>
    %90 = vector.broadcast %89 : vector<1x128xf32> to vector<16x128xf32>
    %91 = arith.subf %85, %90 : vector<16x128xf32>
    %92 = arith.mulf %91, %91 : vector<16x128xf32>
    %cst_49 = arith.constant dense<0.000000e+00> : vector<128xf32>
    %93 = vector.multi_reduction <add>, %92, %cst_49 [0] : vector<16x128xf32> to vector<128xf32>
    %94 = vector.shape_cast %93 : vector<128xf32> to vector<1x128xf32>
    %cst_50 = arith.constant 1.600000e+01 : f32
    %95 = vector.broadcast %cst_50 : f32 to vector<1x128xf32>
    %96 = arith.divf %94, %95 : vector<1x128xf32>
    %97 = vector.broadcast %89 : vector<1x128xf32> to vector<16x128xf32>
    %98 = arith.subf %85, %97 : vector<16x128xf32>
    %cst_51 = arith.constant 9.99999974E-6 : f32
    %99 = vector.broadcast %cst_51 : f32 to vector<1x128xf32>
    %100 = arith.addf %96, %99 : vector<1x128xf32>
    %101 = math.rsqrt %100 : vector<1x128xf32>
    %102 = vector.broadcast %101 : vector<1x128xf32> to vector<16x128xf32>
    %103 = arith.mulf %98, %102 : vector<16x128xf32>
    %c5 = arith.constant 5 : index
    %c0_52 = arith.constant 0 : index
    %104 = vector.load %arg4[%c5, %c0_52] : memref<16x128xf32, #tpu.memory_space<vmem>>, vector<1x128xf32>
    %105 = vector.broadcast %104 : vector<1x128xf32> to vector<16x128xf32>
    %106 = arith.mulf %103, %105 : vector<16x128xf32>
    %c6 = arith.constant 6 : index
    %c0_53 = arith.constant 0 : index
    %107 = vector.load %arg4[%c6, %c0_53] : memref<16x128xf32, #tpu.memory_space<vmem>>, vector<1x128xf32>
    %108 = vector.broadcast %107 : vector<1x128xf32> to vector<16x128xf32>
    %109 = arith.addf %106, %108 : vector<16x128xf32>
    %cst_54 = arith.constant 0.000000e+00 : f32
    %110 = vector.broadcast %cst_54 : f32 to vector<16x128xf32>
    %111 = arith.maximumf %109, %110 : vector<16x128xf32>
    %112 = arith.truncf %111 : vector<16x128xf32> to vector<16x128xbf16>
    %c384 = arith.constant 384 : index
    %c0_55 = arith.constant 0 : index
    %113 = vector.load %arg3[%c384, %c0_55] : memref<1280x128xbf16, #tpu.memory_space<vmem>>, vector<128x128xbf16>
    %cst_56 = arith.constant dense<0.000000e+00> : vector<16x128xf32>
    %114 = tpu.matmul %112, %113, %cst_56 {dimension_numbers = #tpu.dot_dimension_numbers<[1], [0], [0], [1], [0, 0, 1, 1], [], []>} : vector<16x128xbf16>, vector<128x128xbf16>, vector<16x128xf32> -> vector<16x128xf32>
    %c7 = arith.constant 7 : index
    %c0_57 = arith.constant 0 : index
    %115 = vector.load %arg4[%c7, %c0_57] : memref<16x128xf32, #tpu.memory_space<vmem>>, vector<1x128xf32>
    %116 = vector.broadcast %115 : vector<1x128xf32> to vector<16x128xf32>
    %117 = arith.addf %114, %116 : vector<16x128xf32>
    %118 = arith.negf %117 : vector<16x128xf32>
    %119 = math.exp %118 : vector<16x128xf32>
    %cst_58 = arith.constant 1.000000e+00 : f32
    %120 = vector.broadcast %cst_58 : f32 to vector<16x128xf32>
    %121 = arith.addf %120, %119 : vector<16x128xf32>
    %122 = arith.divf %120, %121 : vector<16x128xf32>
    %c0_59 = arith.constant 0 : index
    %c0_60 = arith.constant 0 : index
    %123 = vector.load %arg5[%c0_59, %c0_60] : memref<16x128xf32, #tpu.memory_space<vmem>>, vector<16x128xf32>
    tpu.vector_store %arg5[%c0_59, %c0_60], %74 {strides = array<i32>} : memref<16x128xf32, #tpu.memory_space<vmem>>, vector<16x128xf32>,
    %c0_61 = arith.constant 0 : index
    %c0_62 = arith.constant 0 : index
    %124 = vector.load %arg6[%c0_61, %c0_62] : memref<16x128xf32, #tpu.memory_space<vmem>>, vector<16x128xf32>
    tpu.vector_store %arg6[%c0_61, %c0_62], %36 {strides = array<i32>} : memref<16x128xf32, #tpu.memory_space<vmem>>, vector<16x128xf32>,
    %c0_63 = arith.constant 0 : index
    %c0_64 = arith.constant 0 : index
    %125 = vector.load %arg7[%c0_63, %c0_64] : memref<16x128xf32, #tpu.memory_space<vmem>>, vector<16x128xf32>
    tpu.vector_store %arg7[%c0_63, %c0_64], %79 {strides = array<i32>} : memref<16x128xf32, #tpu.memory_space<vmem>>, vector<16x128xf32>,
    %c0_65 = arith.constant 0 : index
    %c0_66 = arith.constant 0 : index
    %126 = vector.load %arg8[%c0_65, %c0_66] : memref<16x128xf32, #tpu.memory_space<vmem>>, vector<16x128xf32>
    tpu.vector_store %arg8[%c0_65, %c0_66], %122 {strides = array<i32>} : memref<16x128xf32, #tpu.memory_space<vmem>>, vector<16x128xf32>,
    return
  }
}

</mosaic_0001>

<llo_original>
// kernel: _lambda_.1
$region0: #{_lambda_.1}
  #allocation0 [shape = 'u32[]', space=smem, size = 0x4, offset = 0x4, fixed_abs, tag = 'smem constant byte address 0x4 - core index']
  #allocation1 [shape = 'u32[144,128]{1,0:T(1,128)}', space=vmem, size = 0x12000, scoped, tag = 'internal scratch']
  #allocation2 [shape = 'f32[16,128]{1,0:T(8,128)}', space=vmem, size = 0x2000, scoped, tag = 'scratch operand']
  %s0 = inlined_call_operand.vmem [shape: bf16[16,128], index: 0, kind: input, shape index: {}]
  %s1 = inlined_call_operand.vmem [shape: bf16[16,128], index: 1, kind: input, shape index: {}]
  %s2 = inlined_call_operand.vmem [shape: f32[16,16], index: 2, kind: input, shape index: {}]
  %s3 = inlined_call_operand.hbm [shape: bf16[1280,128], index: 3, kind: input, shape index: {}]
  %s4 = inlined_call_operand.vmem [shape: f32[16,128], index: 4, kind: input, shape index: {}]
  %s5 = inlined_call_operand.vmem [shape: f32[16,128], index: 5, kind: output, shape index: {0}]
  %s6 = inlined_call_operand.vmem [shape: f32[16,128], index: 6, kind: output, shape index: {1}]
  %s7 = inlined_call_operand.vmem [shape: f32[16,128], index: 7, kind: output, shape index: {2}]
  %s8 = inlined_call_operand.hbm [shape: f32[16,128], index: 8, kind: output, shape index: {3}]
  %9 = xla_tuple %s5, %s6, %s7, %s8
  %s10 = sld [smem:[#allocation0]]
  $region72: #{_lambda_.1} parent=0
    _
  %s12 = ssub.s32 1, %s10
  %s13 = scalar_select 0, %s12, %s10
  $region1: #{_lambda_.1} parent=0
    #allocation3 [shape = 'u8[327680]{0}', space=vmem, size = 0x50000, scoped, tag = 'input window, operand 3, single buffered']
    #allocation4 [shape = 's32[1]{0}', space=sflag, size = 0x4, scoped, tag = 'scoped memory for _lambda_.1']
    #allocation5 [shape = 's32[1]{0}', space=sflag, size = 0x4, scoped, tag = 'scoped memory for _lambda_.1']
    #allocation6 [shape = 'u8[8192]{0}', space=vmem, size = 0x2000, scoped, tag = 'output window, operand 3, single buffered']
    %14 = vsyncpa [#allocation4], 0
    %15 = vsyncpa [#allocation5], 0
    // Predicated region
    $region2: #{_lambda_.1} parent=1 // pred_check
      _
    $region3: #{_lambda_.1} parent=1 // pred_check_branch
      %17 = sbr.rel (0) target = $region5
    $region4: #{_lambda_.1} parent=1 // pred_region
      _
    $region5: #{_lambda_.1} parent=1 // pred_fallthru
      _
    // Predicated region
    $region6: #{_lambda_.1} parent=1 // pred_check
      _
    $region7: #{_lambda_.1} parent=1 // pred_check_branch
      %19 = sbr.rel (0) target = $region9
    $region8: #{_lambda_.1} parent=1 // pred_region
      _
    $region9: #{_lambda_.1} parent=1 // pred_fallthru
      _
    // Predicated region
    $region10: #{_lambda_.1} parent=1 // pred_check
      _
    $region11: #{_lambda_.1} parent=1 // pred_check_branch
      %21 = sbr.rel (0) target = $region13
    $region12: #{_lambda_.1} parent=1 // pred_region
      _
    $region13: #{_lambda_.1} parent=1 // pred_fallthru
      _
    // Predicated region
    $region14: #{_lambda_.1} parent=1 // pred_check
      _
    $region15: #{_lambda_.1} parent=1 // pred_check_branch
      %23 = sbr.rel (0) target = $region17
    $region16: #{_lambda_.1} parent=1 // pred_region
      %s25 = ssub.s32 10240, 10240
      %26 = vsyncadd [#allocation4], %s25
      %s27 = sshll.u32 [#allocation3], 4
      %s28 = int_to_ptr.vmem [resolvable:$true] %s27
      %33 = dma.hbm_to_vmem [thread:$0]  %s3, 10240, %s28, [#allocation4], 64, 64, 4
    $region17: #{_lambda_.1} parent=1 // pred_fallthru
      _
    // Predicated region
    $region18: #{_lambda_.1} parent=1 // pred_check
      _
    $region19: #{_lambda_.1} parent=1 // pred_check_branch
      %35 = sbr.rel (0) target = $region21
    $region20: #{_lambda_.1} parent=1 // pred_region
      _
    $region21: #{_lambda_.1} parent=1 // pred_fallthru
      _
    // Predicated region
    $region22: #{_lambda_.1} parent=1 // pred_check
      _
    $region23: #{_lambda_.1} parent=1 // pred_check_branch
      %37 = sbr.rel (0) target = $region25
    $region24: #{_lambda_.1} parent=1 // pred_region
      %38 = dma.done [#allocation4], 10240
    $region25: #{_lambda_.1} parent=1 // pred_fallthru
      _
    %v40 = vld [vmem:[%s0] sm:$0xf]
    %v41 = vld [vmem:[%s0 + $0x4] sm:$0xf]
    %v42 = vld [vmem:[#allocation3 + $0x100] sm:$0xf]
    %v43 = vld [vmem:[#allocation3 + $0x104] sm:$0xf]
    %v44 = vld [vmem:[#allocation3 + $0x108] sm:$0xf]
    %v45 = vld [vmem:[#allocation3 + $0x10c] sm:$0xf]
    %v46 = vld [vmem:[#allocation3 + $0x110] sm:$0xf]
    %v47 = vld [vmem:[#allocation3 + $0x114] sm:$0xf]
    %v48 = vld [vmem:[#allocation3 + $0x118] sm:$0xf]
    %v49 = vld [vmem:[#allocation3 + $0x11c] sm:$0xf]
    %v50 = vld [vmem:[#allocation3 + $0x120] sm:$0xf]
    %v51 = vld [vmem:[#allocation3 + $0x124] sm:$0xf]
    %v52 = vld [vmem:[#allocation3 + $0x128] sm:$0xf]
    %v53 = vld [vmem:[#allocation3 + $0x12c] sm:$0xf]
    %v54 = vld [vmem:[#allocation3 + $0x130] sm:$0xf]
    %v55 = vld [vmem:[#allocation3 + $0x134] sm:$0xf]
    %v56 = vld [vmem:[#allocation3 + $0x138] sm:$0xf]
    %v57 = vld [vmem:[#allocation3 + $0x13c] sm:$0xf]
    %v58 = vld [vmem:[%s4 + $0x8] sm:$0x1]
    %v59 = vlaneseq
    %v60 = vshrl.u32 %v59, 7
    %v61 = vsub.s32 0, %v60
    %v62 = vrot.slane %v58, %v61
    %v65 = vunpack.c.l.b16 %v40
    %v66 = vunpack.c.l.b16 %v41
    %v67 = vpack.c.b16 %v66, %v65
    %v85 = vunpack.c.l.b16 %v42
    %v86 = vunpack.c.l.b16 %v43
    %v87 = vunpack.c.l.b16 %v44
    %v88 = vunpack.c.l.b16 %v45
    %v89 = vunpack.c.l.b16 %v46
    %v90 = vunpack.c.l.b16 %v47
    %v91 = vunpack.c.l.b16 %v48
    %v92 = vunpack.c.l.b16 %v49
    %v93 = vunpack.c.l.b16 %v50
    %v94 = vunpack.c.l.b16 %v51
    %v95 = vunpack.c.l.b16 %v52
    %v96 = vunpack.c.l.b16 %v53
    %v97 = vunpack.c.l.b16 %v54
    %v98 = vunpack.c.l.b16 %v55
    %v99 = vunpack.c.l.b16 %v56
    %v100 = vunpack.c.l.b16 %v57
    %v101 = vpack.c.b16 %v86, %v85
    %v102 = vpack.c.b16 %v88, %v87
    %v103 = vpack.c.b16 %v90, %v89
    %v104 = vpack.c.b16 %v92, %v91
    %v105 = vpack.c.b16 %v94, %v93
    %v106 = vpack.c.b16 %v96, %v95
    %v107 = vpack.c.b16 %v98, %v97
    %v108 = vpack.c.b16 %v100, %v99
    %117 = vmatprep.subr.bf16.mxu0 0
    %118 = vmatpush1.bf16.msra.mxu0 %v101
    %119 = vmatprep.subr.bf16.mxu0 0
    %120 = vmatpush1.bf16.msra.mxu0 %v102
    %121 = vmatprep.subr.bf16.mxu0 0
    %122 = vmatpush1.bf16.msra.mxu0 %v103
    %123 = vmatprep.subr.bf16.mxu0 0
    %124 = vmatpush1.bf16.msra.mxu0 %v104
    %125 = vmatprep.subr.bf16.mxu0 0
    %126 = vmatpush1.bf16.msra.mxu0 %v105
    %127 = vmatprep.subr.bf16.mxu0 0
    %128 = vmatpush1.bf16.msra.mxu0 %v106
    %129 = vmatprep.subr.bf16.mxu0 0
    %130 = vmatpush1.bf16.msra.mxu0 %v107
    %131 = vmatprep.subr.bf16.mxu0 0
    %132 = vmatpush1.bf16.msra.mxu0 %v108
    %133 = vmatprep.subr.bf16.mxu0 0
    %134 = vmatpush1.bf16.msra.mxu0 0
    %135 = vmatprep.subr.bf16.mxu0 0
    %136 = vmatpush1.bf16.msra.mxu0 0
    %137 = vmatprep.subr.bf16.mxu0 0
    %138 = vmatpush1.bf16.msra.mxu0 0
    %139 = vmatprep.subr.bf16.mxu0 0
    %140 = vmatpush1.bf16.msra.mxu0 0
    %141 = vmatprep.subr.bf16.mxu0 0
    %142 = vmatpush1.bf16.msra.mxu0 0
    %143 = vmatprep.subr.bf16.mxu0 0
    %144 = vmatpush1.bf16.msra.mxu0 0
    %145 = vmatprep.subr.bf16.mxu0 0
    %146 = vmatpush1.bf16.msra.mxu0 0
    %147 = vmatprep.subr.bf16.mxu0 0
    %148 = vmatpush1.bf16.msra.mxu0 0
    %149 = vmatprep.mubr.bf16.mxu0 0
    %150 = vmatmul.mubr.bf16.gmra.mrb[0].mxu0 %v67
    %v151 = vpop.f32.mrb[0].mxu0
    %v152 = vadd.f32 %v62, %v151
    %v153 = vpop.f32.mrb[0].mxu0
    %v154 = vpop.f32.mrb[0].mxu0
    %v155 = vadd.f32 %v62, %v154
    %v156 = vpop.f32.mrb[0].mxu0
    %157 = vdwg.mxu0
    %v158 = vmax.f32 %v152, 0.0
    %v159 = vmax.f32 %v155, 0.0
    loop: start=0, step=1, limit=2
    $region26: #{_lambda_.1} parent=1 // loop_pre_header
      _
    $region27: #{_lambda_.1} parent=1 // loop_header
      %s161 = sphi 0, %s165
      %p162 = scmp.ge.s32.totalorder %s161, 2
    $region28: #{_lambda_.1} parent=1 // loop_header_branch
      %164 = sbr.rel (%p162) target = $region32
    $region29: #{_lambda_.1} parent=1 // loop_body
      %s166 = smul.u32 %s161, 8
      %s167 = scalar_lea.vmem %s2, %s166
      %v168 = vld [vmem:[%s167] sm:$0xff]
      %v169 = vsub.f32 %v168, 1.0
      %v170 = vmul.f32 %v169, 1e+30
      %v171 = vlaneseq
      %v172 = vshrl.u32 %v171, 7
      %v173 = vsub.s32 0, %v172
      %v174 = vrot.slane %v170, %v173
      %176 = vbcast.lane.b32.xlu0 %v174, 256
      %v177 = vpop.permute.xlu0 %176
      %s179 = sor.u32 256, 8
      %180 = vbcast.lane.b32.xlu0 %v174, %s179
      %v181 = vpop.permute.xlu0 %180
      %v182 = vlaneseq
      %v183 = vshrl.u32 %v182, 7
      %v184 = vsub.s32 1, %v183
      %v185 = vrot.slane %v170, %v184
      %187 = vbcast.lane.b32.xlu0 %v185, 256
      %v188 = vpop.permute.xlu0 %187
      %s190 = sor.u32 256, 8
      %191 = vbcast.lane.b32.xlu0 %v185, %s190
      %v192 = vpop.permute.xlu0 %191
      %v193 = vlaneseq
      %v194 = vshrl.u32 %v193, 7
      %v195 = vsub.s32 2, %v194
      %v196 = vrot.slane %v170, %v195
      %198 = vbcast.lane.b32.xlu0 %v196, 256
      %v199 = vpop.permute.xlu0 %198
      %s201 = sor.u32 256, 8
      %202 = vbcast.lane.b32.xlu0 %v196, %s201
      %v203 = vpop.permute.xlu0 %202
      %v204 = vlaneseq
      %v205 = vshrl.u32 %v204, 7
      %v206 = vsub.s32 3, %v205
      %v207 = vrot.slane %v170, %v206
      %209 = vbcast.lane.b32.xlu0 %v207, 256
      %v210 = vpop.permute.xlu0 %209
      %s212 = sor.u32 256, 8
      %213 = vbcast.lane.b32.xlu0 %v207, %s212
      %v214 = vpop.permute.xlu0 %213
      %v215 = vlaneseq
      %v216 = vshrl.u32 %v215, 7
      %v217 = vsub.s32 4, %v216
      %v218 = vrot.slane %v170, %v217
      %220 = vbcast.lane.b32.xlu0 %v218, 256
      %v221 = vpop.permute.xlu0 %220
      %s223 = sor.u32 256, 8
      %224 = vbcast.lane.b32.xlu0 %v218, %s223
      %v225 = vpop.permute.xlu0 %224
      %v226 = vlaneseq
      %v227 = vshrl.u32 %v226, 7
      %v228 = vsub.s32 5, %v227
      %v229 = vrot.slane %v170, %v228
      %231 = vbcast.lane.b32.xlu0 %v229, 256
      %v232 = vpop.permute.xlu0 %231
      %s234 = sor.u32 256, 8
      %235 = vbcast.lane.b32.xlu0 %v229, %s234
      %v236 = vpop.permute.xlu0 %235
      %v237 = vlaneseq
      %v238 = vshrl.u32 %v237, 7
      %v239 = vsub.s32 6, %v238
      %v240 = vrot.slane %v170, %v239
      %242 = vbcast.lane.b32.xlu0 %v240, 256
      %v243 = vpop.permute.xlu0 %242
      %s245 = sor.u32 256, 8
      %246 = vbcast.lane.b32.xlu0 %v240, %s245
      %v247 = vpop.permute.xlu0 %246
      %v248 = vlaneseq
      %v249 = vshrl.u32 %v248, 7
      %v250 = vsub.s32 7, %v249
      %v251 = vrot.slane %v170, %v250
      %253 = vbcast.lane.b32.xlu0 %v251, 256
      %v254 = vpop.permute.xlu0 %253
      %s256 = sor.u32 256, 8
      %257 = vbcast.lane.b32.xlu0 %v251, %s256
      %v258 = vpop.permute.xlu0 %257
      %v259 = vadd.f32 %v158, %v177
      %v260 = vadd.f32 %v159, %v181
      %v261 = vadd.f32 %v158, %v188
      %v262 = vadd.f32 %v159, %v192
      %v263 = vadd.f32 %v158, %v199
      %v264 = vadd.f32 %v159, %v203
      %v265 = vadd.f32 %v158, %v210
      %v266 = vadd.f32 %v159, %v214
      %v267 = vadd.f32 %v158, %v221
      %v268 = vadd.f32 %v159, %v225
      %v269 = vadd.f32 %v158, %v232
      %v270 = vadd.f32 %v159, %v236
      %v271 = vadd.f32 %v158, %v243
      %v272 = vadd.f32 %v159, %v247
      %v273 = vadd.f32 %v158, %v254
      %v274 = vadd.f32 %v159, %v258
      %v275 = vmax.f32 %v259, %v260
      %v276 = vrot.slane %v275, 4
      %v277 = vmax.f32 %v275, %v276
      %v278 = vrot.slane %v277, 2
      %v279 = vmax.f32 %v277, %v278
      %v280 = vrot.slane %v279, 1
      %v281 = vmax.f32 %v279, %v280
      %v282 = vmax.f32 %v261, %v262
      %v283 = vrot.slane %v282, 4
      %v284 = vmax.f32 %v282, %v283
      %v285 = vrot.slane %v284, 2
      %v286 = vmax.f32 %v284, %v285
      %v287 = vrot.slane %v286, 1
      %v288 = vmax.f32 %v286, %v287
      %v289 = vmax.f32 %v263, %v264
      %v290 = vrot.slane %v289, 4
      %v291 = vmax.f32 %v289, %v290
      %v292 = vrot.slane %v291, 2
      %v293 = vmax.f32 %v291, %v292
      %v294 = vrot.slane %v293, 1
      %v295 = vmax.f32 %v293, %v294
      %v296 = vmax.f32 %v265, %v266
      %v297 = vrot.slane %v296, 4
      %v298 = vmax.f32 %v296, %v297
      %v299 = vrot.slane %v298, 2
      %v300 = vmax.f32 %v298, %v299
      %v301 = vrot.slane %v300, 1
      %v302 = vmax.f32 %v300, %v301
      %v303 = vmax.f32 %v267, %v268
      %v304 = vrot.slane %v303, 4
      %v305 = vmax.f32 %v303, %v304
      %v306 = vrot.slane %v305, 2
      %v307 = vmax.f32 %v305, %v306
      %v308 = vrot.slane %v307, 1
      %v309 = vmax.f32 %v307, %v308
      %v310 = vmax.f32 %v269, %v270
      %v311 = vrot.slane %v310, 4
      %v312 = vmax.f32 %v310, %v311
      %v313 = vrot.slane %v312, 2
      %v314 = vmax.f32 %v312, %v313
      %v315 = vrot.slane %v314, 1
      %v316 = vmax.f32 %v314, %v315
      %v317 = vmax.f32 %v271, %v272
      %v318 = vrot.slane %v317, 4
      %v319 = vmax.f32 %v317, %v318
      %v320 = vrot.slane %v319, 2
      %v321 = vmax.f32 %v319, %v320
      %v322 = vrot.slane %v321, 1
      %v323 = vmax.f32 %v321, %v322
      %v324 = vmax.f32 %v273, %v274
      %v325 = vrot.slane %v324, 4
      %v326 = vmax.f32 %v324, %v325
      %v327 = vrot.slane %v326, 2
      %v328 = vmax.f32 %v326, %v327
      %v329 = vrot.slane %v328, 1
      %v330 = vmax.f32 %v328, %v329
      %v331 = vmax.f32 %v281, 0.0
      %v332 = vmax.f32 %v288, 0.0
      %v333 = vmax.f32 %v295, 0.0
      %v334 = vmax.f32 %v302, 0.0
      %v335 = vmax.f32 %v309, 0.0
      %v336 = vmax.f32 %v316, 0.0
      %v337 = vmax.f32 %v323, 0.0
      %v338 = vmax.f32 %v330, 0.0
      %vm347 = vcmask 1041409
      %v348 = vsel %vm347, %v332, %v331
      %vm349 = vcmask 1042434
      %v350 = vsel %vm349, %v333, %v348
      %vm351 = vcmask 1043459
      %v352 = vsel %vm351, %v334, %v350
      %vm353 = vcmask 1044484
      %v354 = vsel %vm353, %v335, %v352
      %vm355 = vcmask 1045509
      %v356 = vsel %vm355, %v336, %v354
      %vm357 = vcmask 1046534
      %v358 = vsel %vm357, %v337, %v356
      %vm359 = vcmask 1047559
      %v360 = vsel %vm359, %v338, %v358
      %s362 = scalar_lea.vmem [#allocation2], %s166
      %363 = vst [vmem:[%s362] sm:$0xff] %v360
    $region30: #{_lambda_.1} parent=1 // loop_footer
      %s165 = sadd.s32 1, %s161
    $region31: #{_lambda_.1} parent=1 // loop_footer_branch
      %160 = sbr.rel target = $region27
    $region32: #{_lambda_.1} parent=1 // loop_exit
      _
    %v364 = vld [vmem:[#allocation2] sm:$0xff]
    %v365 = vld [vmem:[#allocation2 + $0x8] sm:$0xff]
    %v366 = vpack.c.bf16 %v365, %v364
    %v367 = vld [vmem:[#allocation3 + $0x180] sm:$0xf]
    %v368 = vld [vmem:[#allocation3 + $0x184] sm:$0xf]
    %v369 = vld [vmem:[#allocation3 + $0x188] sm:$0xf]
    %v370 = vld [vmem:[#allocation3 + $0x18c] sm:$0xf]
    %v371 = vld [vmem:[#allocation3 + $0x190] sm:$0xf]
    %v372 = vld [vmem:[#allocation3 + $0x194] sm:$0xf]
    %v373 = vld [vmem:[#allocation3 + $0x198] sm:$0xf]
    %v374 = vld [vmem:[#allocation3 + $0x19c] sm:$0xf]
    %v375 = vld [vmem:[#allocation3 + $0x1a0] sm:$0xf]
    %v376 = vld [vmem:[#allocation3 + $0x1a4] sm:$0xf]
    %v377 = vld [vmem:[#allocation3 + $0x1a8] sm:$0xf]
    %v378 = vld [vmem:[#allocation3 + $0x1ac] sm:$0xf]
    %v379 = vld [vmem:[#allocation3 + $0x1b0] sm:$0xf]
    %v380 = vld [vmem:[#allocation3 + $0x1b4] sm:$0xf]
    %v381 = vld [vmem:[#allocation3 + $0x1b8] sm:$0xf]
    %v382 = vld [vmem:[#allocation3 + $0x1bc] sm:$0xf]
    %v383 = vld [vmem:[#allocation3 + $0x1c0] sm:$0xf]
    %v384 = vld [vmem:[#allocation3 + $0x1c4] sm:$0xf]
    %v385 = vld [vmem:[#allocation3 + $0x1c8] sm:$0xf]
    %v386 = vld [vmem:[#allocation3 + $0x1cc] sm:$0xf]
    %v387 = vld [vmem:[#allocation3 + $0x1d0] sm:$0xf]
    %v388 = vld [vmem:[#allocation3 + $0x1d4] sm:$0xf]
    %v389 = vld [vmem:[#allocation3 + $0x1d8] sm:$0xf]
    %v390 = vld [vmem:[#allocation3 + $0x1dc] sm:$0xf]
    %v391 = vld [vmem:[#allocation3 + $0x1e0] sm:$0xf]
    %v392 = vld [vmem:[#allocation3 + $0x1e4] sm:$0xf]
    %v393 = vld [vmem:[#allocation3 + $0x1e8] sm:$0xf]
    %v394 = vld [vmem:[#allocation3 + $0x1ec] sm:$0xf]
    %v395 = vld [vmem:[#allocation3 + $0x1f0] sm:$0xf]
    %v396 = vld [vmem:[#allocation3 + $0x1f4] sm:$0xf]
    %v397 = vld [vmem:[#allocation3 + $0x1f8] sm:$0xf]
    %v398 = vld [vmem:[#allocation3 + $0x1fc] sm:$0xf]
    %v399 = vld [vmem:[%s4 + $0xa] sm:$0x1]
    %v400 = vlaneseq
    %v401 = vshrl.u32 %v400, 7
    %v402 = vsub.s32 0, %v401
    %v403 = vrot.slane %v399, %v402
    %v436 = vunpack.c.l.b16 %v367
    %v437 = vunpack.c.l.b16 %v368
    %v438 = vunpack.c.l.b16 %v369
    %v439 = vunpack.c.l.b16 %v370
    %v440 = vunpack.c.l.b16 %v371
    %v441 = vunpack.c.l.b16 %v372
    %v442 = vunpack.c.l.b16 %v373
    %v443 = vunpack.c.l.b16 %v374
    %v444 = vunpack.c.l.b16 %v375
    %v445 = vunpack.c.l.b16 %v376
    %v446 = vunpack.c.l.b16 %v377
    %v447 = vunpack.c.l.b16 %v378
    %v448 = vunpack.c.l.b16 %v379
    %v449 = vunpack.c.l.b16 %v380
    %v450 = vunpack.c.l.b16 %v381
    %v451 = vunpack.c.l.b16 %v382
    %v452 = vunpack.c.l.b16 %v383
    %v453 = vunpack.c.l.b16 %v384
    %v454 = vunpack.c.l.b16 %v385
    %v455 = vunpack.c.l.b16 %v386
    %v456 = vunpack.c.l.b16 %v387
    %v457 = vunpack.c.l.b16 %v388
    %v458 = vunpack.c.l.b16 %v389
    %v459 = vunpack.c.l.b16 %v390
    %v460 = vunpack.c.l.b16 %v391
    %v461 = vunpack.c.l.b16 %v392
    %v462 = vunpack.c.l.b16 %v393
    %v463 = vunpack.c.l.b16 %v394
    %v464 = vunpack.c.l.b16 %v395
    %v465 = vunpack.c.l.b16 %v396
    %v466 = vunpack.c.l.b16 %v397
    %v467 = vunpack.c.l.b16 %v398
    %v468 = vpack.c.b16 %v437, %v436
    %v469 = vpack.c.b16 %v439, %v438
    %v470 = vpack.c.b16 %v441, %v440
    %v471 = vpack.c.b16 %v443, %v442
    %v472 = vpack.c.b16 %v445, %v444
    %v473 = vpack.c.b16 %v447, %v446
    %v474 = vpack.c.b16 %v449, %v448
    %v475 = vpack.c.b16 %v451, %v450
    %v476 = vpack.c.b16 %v453, %v452
    %v477 = vpack.c.b16 %v455, %v454
    %v478 = vpack.c.b16 %v457, %v456
    %v479 = vpack.c.b16 %v459, %v458
    %v480 = vpack.c.b16 %v461, %v460
    %v481 = vpack.c.b16 %v463, %v462
    %v482 = vpack.c.b16 %v465, %v464
    %v483 = vpack.c.b16 %v467, %v466
    %500 = vmatprep.subr.bf16.mxu0 0
    %501 = vmatpush1.bf16.msra.mxu0 %v468
    %502 = vmatprep.subr.bf16.mxu0 0
    %503 = vmatpush1.bf16.msra.mxu0 %v469
    %504 = vmatprep.subr.bf16.mxu0 0
    %505 = vmatpush1.bf16.msra.mxu0 %v470
    %506 = vmatprep.subr.bf16.mxu0 0
    %507 = vmatpush1.bf16.msra.mxu0 %v471
    %508 = vmatprep.subr.bf16.mxu0 0
    %509 = vmatpush1.bf16.msra.mxu0 %v472
    %510 = vmatprep.subr.bf16.mxu0 0
    %511 = vmatpush1.bf16.msra.mxu0 %v473
    %512 = vmatprep.subr.bf16.mxu0 0
    %513 = vmatpush1.bf16.msra.mxu0 %v474
    %514 = vmatprep.subr.bf16.mxu0 0
    %515 = vmatpush1.bf16.msra.mxu0 %v475
    %516 = vmatprep.subr.bf16.mxu0 0
    %517 = vmatpush1.bf16.msra.mxu0 %v476
    %518 = vmatprep.subr.bf16.mxu0 0
    %519 = vmatpush1.bf16.msra.mxu0 %v477
    %520 = vmatprep.subr.bf16.mxu0 0
    %521 = vmatpush1.bf16.msra.mxu0 %v478
    %522 = vmatprep.subr.bf16.mxu0 0
    %523 = vmatpush1.bf16.msra.mxu0 %v479
    %524 = vmatprep.subr.bf16.mxu0 0
    %525 = vmatpush1.bf16.msra.mxu0 %v480
    %526 = vmatprep.subr.bf16.mxu0 0
    %527 = vmatpush1.bf16.msra.mxu0 %v481
    %528 = vmatprep.subr.bf16.mxu0 0
    %529 = vmatpush1.bf16.msra.mxu0 %v482
    %530 = vmatprep.subr.bf16.mxu0 0
    %531 = vmatpush1.bf16.msra.mxu0 %v483
    %532 = vmatprep.mubr.bf16.mxu0 %v366
    %533 = vmatmul.mubr.bf16.gmra.mrb[0].mxu0 %v67
    %v534 = vpop.f32.mrb[0].mxu0
    %v535 = vadd.f32 %v403, %v534
    %v536 = vpop.f32.mrb[0].mxu0
    %v537 = vpop.f32.mrb[0].mxu0
    %v538 = vadd.f32 %v403, %v537
    %v539 = vpop.f32.mrb[0].mxu0
    %540 = vdwg.mxu0
    %v541 = vmax.f32 %v535, 0.0
    %v542 = vmax.f32 %v538, 0.0
    %v543 = vpack.c.bf16 %v542, %v541
    %v544 = vld [vmem:[#allocation3 + $0x140] sm:$0xf]
    %v545 = vld [vmem:[#allocation3 + $0x144] sm:$0xf]
    %v546 = vld [vmem:[#allocation3 + $0x148] sm:$0xf]
    %v547 = vld [vmem:[#allocation3 + $0x14c] sm:$0xf]
    %v548 = vld [vmem:[#allocation3 + $0x150] sm:$0xf]
    %v549 = vld [vmem:[#allocation3 + $0x154] sm:$0xf]
    %v550 = vld [vmem:[#allocation3 + $0x158] sm:$0xf]
    %v551 = vld [vmem:[#allocation3 + $0x15c] sm:$0xf]
    %v552 = vld [vmem:[#allocation3 + $0x160] sm:$0xf]
    %v553 = vld [vmem:[#allocation3 + $0x164] sm:$0xf]
    %v554 = vld [vmem:[#allocation3 + $0x168] sm:$0xf]
    %v555 = vld [vmem:[#allocation3 + $0x16c] sm:$0xf]
    %v556 = vld [vmem:[#allocation3 + $0x170] sm:$0xf]
    %v557 = vld [vmem:[#allocation3 + $0x174] sm:$0xf]
    %v558 = vld [vmem:[#allocation3 + $0x178] sm:$0xf]
    %v559 = vld [vmem:[#allocation3 + $0x17c] sm:$0xf]
    %v560 = vld [vmem:[%s4 + $0x9] sm:$0x1]
    %v561 = vlaneseq
    %v562 = vshrl.u32 %v561, 7
    %v563 = vsub.s32 0, %v562
    %v564 = vrot.slane %v560, %v563
    %v581 = vunpack.c.l.b16 %v544
    %v582 = vunpack.c.l.b16 %v545
    %v583 = vunpack.c.l.b16 %v546
    %v584 = vunpack.c.l.b16 %v547
    %v585 = vunpack.c.l.b16 %v548
    %v586 = vunpack.c.l.b16 %v549
    %v587 = vunpack.c.l.b16 %v550
    %v588 = vunpack.c.l.b16 %v551
    %v589 = vunpack.c.l.b16 %v552
    %v590 = vunpack.c.l.b16 %v553
    %v591 = vunpack.c.l.b16 %v554
    %v592 = vunpack.c.l.b16 %v555
    %v593 = vunpack.c.l.b16 %v556
    %v594 = vunpack.c.l.b16 %v557
    %v595 = vunpack.c.l.b16 %v558
    %v596 = vunpack.c.l.b16 %v559
    %v597 = vpack.c.b16 %v582, %v581
    %v598 = vpack.c.b16 %v584, %v583
    %v599 = vpack.c.b16 %v586, %v585
    %v600 = vpack.c.b16 %v588, %v587
    %v601 = vpack.c.b16 %v590, %v589
    %v602 = vpack.c.b16 %v592, %v591
    %v603 = vpack.c.b16 %v594, %v593
    %v604 = vpack.c.b16 %v596, %v595
    %613 = vmatprep.subr.bf16.mxu0 0
    %614 = vmatpush1.bf16.msra.mxu0 %v597
    %615 = vmatprep.subr.bf16.mxu0 0
    %616 = vmatpush1.bf16.msra.mxu0 %v598
    %617 = vmatprep.subr.bf16.mxu0 0
    %618 = vmatpush1.bf16.msra.mxu0 %v599
    %619 = vmatprep.subr.bf16.mxu0 0
    %620 = vmatpush1.bf16.msra.mxu0 %v600
    %621 = vmatprep.subr.bf16.mxu0 0
    %622 = vmatpush1.bf16.msra.mxu0 %v601
    %623 = vmatprep.subr.bf16.mxu0 0
    %624 = vmatpush1.bf16.msra.mxu0 %v602
    %625 = vmatprep.subr.bf16.mxu0 0
    %626 = vmatpush1.bf16.msra.mxu0 %v603
    %627 = vmatprep.subr.bf16.mxu0 0
    %628 = vmatpush1.bf16.msra.mxu0 %v604
    %629 = vmatprep.subr.bf16.mxu0 0
    %630 = vmatpush1.bf16.msra.mxu0 0
    %631 = vmatprep.subr.bf16.mxu0 0
    %632 = vmatpush1.bf16.msra.mxu0 0
    %633 = vmatprep.subr.bf16.mxu0 0
    %634 = vmatpush1.bf16.msra.mxu0 0
    %635 = vmatprep.subr.bf16.mxu0 0
    %636 = vmatpush1.bf16.msra.mxu0 0
    %637 = vmatprep.subr.bf16.mxu0 0
    %638 = vmatpush1.bf16.msra.mxu0 0
    %639 = vmatprep.subr.bf16.mxu0 0
    %640 = vmatpush1.bf16.msra.mxu0 0
    %641 = vmatprep.subr.bf16.mxu0 0
    %642 = vmatpush1.bf16.msra.mxu0 0
    %643 = vmatprep.subr.bf16.mxu0 0
    %644 = vmatpush1.bf16.msra.mxu0 0
    %645 = vmatprep.mubr.bf16.mxu0 0
    %646 = vmatmul.mubr.bf16.gmra.mrb[0].mxu0 %v543
    %v647 = vpop.f32.mrb[0].mxu0
    %v648 = vadd.f32 %v564, %v647
    %v649 = vpop.f32.mrb[0].mxu0
    %v650 = vpop.f32.mrb[0].mxu0
    %v651 = vadd.f32 %v564, %v650
    %v652 = vpop.f32.mrb[0].mxu0
    %653 = vdwg.mxu0
    %v654 = vmax.f32 %v648, 0.0
    %v655 = vmax.f32 %v651, 0.0
    loop: start=0, step=1, limit=2
    $region33: #{_lambda_.1} parent=1 // loop_pre_header
      _
    $region34: #{_lambda_.1} parent=1 // loop_header
      %s657 = sphi 0, %s661
      %p658 = scmp.ge.s32.totalorder %s657, 2
    $region35: #{_lambda_.1} parent=1 // loop_header_branch
      %660 = sbr.rel (%p658) target = $region39
    $region36: #{_lambda_.1} parent=1 // loop_body
      %s662 = smul.u32 %s657, 8
      %s663 = scalar_lea.vmem %s2, %s662
      %v664 = vld [vmem:[%s663] sm:$0xff]
      %v665 = vsub.f32 %v664, 1.0
      %v666 = vmul.f32 %v665, 1e+30
      %v667 = vlaneseq
      %v668 = vshrl.u32 %v667, 7
      %v669 = vsub.s32 0, %v668
      %v670 = vrot.slane %v666, %v669
      %672 = vbcast.lane.b32.xlu0 %v670, 256
      %v673 = vpop.permute.xlu0 %672
      %s675 = sor.u32 256, 8
      %676 = vbcast.lane.b32.xlu0 %v670, %s675
      %v677 = vpop.permute.xlu0 %676
      %v678 = vlaneseq
      %v679 = vshrl.u32 %v678, 7
      %v680 = vsub.s32 1, %v679
      %v681 = vrot.slane %v666, %v680
      %683 = vbcast.lane.b32.xlu0 %v681, 256
      %v684 = vpop.permute.xlu0 %683
      %s686 = sor.u32 256, 8
      %687 = vbcast.lane.b32.xlu0 %v681, %s686
      %v688 = vpop.permute.xlu0 %687
      %v689 = vlaneseq
      %v690 = vshrl.u32 %v689, 7
      %v691 = vsub.s32 2, %v690
      %v692 = vrot.slane %v666, %v691
      %694 = vbcast.lane.b32.xlu0 %v692, 256
      %v695 = vpop.permute.xlu0 %694
      %s697 = sor.u32 256, 8
      %698 = vbcast.lane.b32.xlu0 %v692, %s697
      %v699 = vpop.permute.xlu0 %698
      %v700 = vlaneseq
      %v701 = vshrl.u32 %v700, 7
      %v702 = vsub.s32 3, %v701
      %v703 = vrot.slane %v666, %v702
      %705 = vbcast.lane.b32.xlu0 %v703, 256
      %v706 = vpop.permute.xlu0 %705
      %s708 = sor.u32 256, 8
      %709 = vbcast.lane.b32.xlu0 %v703, %s708
      %v710 = vpop.permute.xlu0 %709
      %v711 = vlaneseq
      %v712 = vshrl.u32 %v711, 7
      %v713 = vsub.s32 4, %v712
      %v714 = vrot.slane %v666, %v713
      %716 = vbcast.lane.b32.xlu0 %v714, 256
      %v717 = vpop.permute.xlu0 %716
      %s719 = sor.u32 256, 8
      %720 = vbcast.lane.b32.xlu0 %v714, %s719
      %v721 = vpop.permute.xlu0 %720
      %v722 = vlaneseq
      %v723 = vshrl.u32 %v722, 7
      %v724 = vsub.s32 5, %v723
      %v725 = vrot.slane %v666, %v724
      %727 = vbcast.lane.b32.xlu0 %v725, 256
      %v728 = vpop.permute.xlu0 %727
      %s730 = sor.u32 256, 8
      %731 = vbcast.lane.b32.xlu0 %v725, %s730
      %v732 = vpop.permute.xlu0 %731
      %v733 = vlaneseq
      %v734 = vshrl.u32 %v733, 7
      %v735 = vsub.s32 6, %v734
      %v736 = vrot.slane %v666, %v735
      %738 = vbcast.lane.b32.xlu0 %v736, 256
      %v739 = vpop.permute.xlu0 %738
      %s741 = sor.u32 256, 8
      %742 = vbcast.lane.b32.xlu0 %v736, %s741
      %v743 = vpop.permute.xlu0 %742
      %v744 = vlaneseq
      %v745 = vshrl.u32 %v744, 7
      %v746 = vsub.s32 7, %v745
      %v747 = vrot.slane %v666, %v746
      %749 = vbcast.lane.b32.xlu0 %v747, 256
      %v750 = vpop.permute.xlu0 %749
      %s752 = sor.u32 256, 8
      %753 = vbcast.lane.b32.xlu0 %v747, %s752
      %v754 = vpop.permute.xlu0 %753
      %v755 = vadd.f32 %v654, %v673
      %v756 = vadd.f32 %v655, %v677
      %v757 = vadd.f32 %v654, %v684
      %v758 = vadd.f32 %v655, %v688
      %v759 = vadd.f32 %v654, %v695
      %v760 = vadd.f32 %v655, %v699
      %v761 = vadd.f32 %v654, %v706
      %v762 = vadd.f32 %v655, %v710
      %v763 = vadd.f32 %v654, %v717
      %v764 = vadd.f32 %v655, %v721
      %v765 = vadd.f32 %v654, %v728
      %v766 = vadd.f32 %v655, %v732
      %v767 = vadd.f32 %v654, %v739
      %v768 = vadd.f32 %v655, %v743
      %v769 = vadd.f32 %v654, %v750
      %v770 = vadd.f32 %v655, %v754
      %v771 = vmax.f32 %v755, %v756
      %v772 = vrot.slane %v771, 4
      %v773 = vmax.f32 %v771, %v772
      %v774 = vrot.slane %v773, 2
      %v775 = vmax.f32 %v773, %v774
      %v776 = vrot.slane %v775, 1
      %v777 = vmax.f32 %v775, %v776
      %v778 = vmax.f32 %v757, %v758
      %v779 = vrot.slane %v778, 4
      %v780 = vmax.f32 %v778, %v779
      %v781 = vrot.slane %v780, 2
      %v782 = vmax.f32 %v780, %v781
      %v783 = vrot.slane %v782, 1
      %v784 = vmax.f32 %v782, %v783
      %v785 = vmax.f32 %v759, %v760
      %v786 = vrot.slane %v785, 4
      %v787 = vmax.f32 %v785, %v786
      %v788 = vrot.slane %v787, 2
      %v789 = vmax.f32 %v787, %v788
      %v790 = vrot.slane %v789, 1
      %v791 = vmax.f32 %v789, %v790
      %v792 = vmax.f32 %v761, %v762
      %v793 = vrot.slane %v792, 4
      %v794 = vmax.f32 %v792, %v793
      %v795 = vrot.slane %v794, 2
      %v796 = vmax.f32 %v794, %v795
      %v797 = vrot.slane %v796, 1
      %v798 = vmax.f32 %v796, %v797
      %v799 = vmax.f32 %v763, %v764
      %v800 = vrot.slane %v799, 4
      %v801 = vmax.f32 %v799, %v800
      %v802 = vrot.slane %v801, 2
      %v803 = vmax.f32 %v801, %v802
      %v804 = vrot.slane %v803, 1
      %v805 = vmax.f32 %v803, %v804
      %v806 = vmax.f32 %v765, %v766
      %v807 = vrot.slane %v806, 4
      %v808 = vmax.f32 %v806, %v807
      %v809 = vrot.slane %v808, 2
      %v810 = vmax.f32 %v808, %v809
      %v811 = vrot.slane %v810, 1
      %v812 = vmax.f32 %v810, %v811
      %v813 = vmax.f32 %v767, %v768
      %v814 = vrot.slane %v813, 4
      %v815 = vmax.f32 %v813, %v814
      %v816 = vrot.slane %v815, 2
      %v817 = vmax.f32 %v815, %v816
      %v818 = vrot.slane %v817, 1
      %v819 = vmax.f32 %v817, %v818
      %v820 = vmax.f32 %v769, %v770
      %v821 = vrot.slane %v820, 4
      %v822 = vmax.f32 %v820, %v821
      %v823 = vrot.slane %v822, 2
      %v824 = vmax.f32 %v822, %v823
      %v825 = vrot.slane %v824, 1
      %v826 = vmax.f32 %v824, %v825
      %v827 = vmax.f32 %v777, 0.0
      %v828 = vmax.f32 %v784, 0.0
      %v829 = vmax.f32 %v791, 0.0
      %v830 = vmax.f32 %v798, 0.0
      %v831 = vmax.f32 %v805, 0.0
      %v832 = vmax.f32 %v812, 0.0
      %v833 = vmax.f32 %v819, 0.0
      %v834 = vmax.f32 %v826, 0.0
      %vm843 = vcmask 1041409
      %v844 = vsel %vm843, %v828, %v827
      %vm845 = vcmask 1042434
      %v846 = vsel %vm845, %v829, %v844
      %vm847 = vcmask 1043459
      %v848 = vsel %vm847, %v830, %v846
      %vm849 = vcmask 1044484
      %v850 = vsel %vm849, %v831, %v848
      %vm851 = vcmask 1045509
      %v852 = vsel %vm851, %v832, %v850
      %vm853 = vcmask 1046534
      %v854 = vsel %vm853, %v833, %v852
      %vm855 = vcmask 1047559
      %v856 = vsel %vm855, %v834, %v854
      %s858 = scalar_lea.vmem [#allocation2], %s662
      %859 = vst [vmem:[%s858] sm:$0xff] %v856
    $region37: #{_lambda_.1} parent=1 // loop_footer
      %s661 = sadd.s32 1, %s657
    $region38: #{_lambda_.1} parent=1 // loop_footer_branch
      %656 = sbr.rel target = $region34
    $region39: #{_lambda_.1} parent=1 // loop_exit
      _
    %v860 = vld [vmem:[#allocation2] sm:$0xff]
    %v861 = vld [vmem:[#allocation2 + $0x8] sm:$0xff]
    %v862 = vpack.c.bf16 %v861, %v860
    %v863 = vld [vmem:[#allocation3 + $0x200] sm:$0xf]
    %v864 = vld [vmem:[#allocation3 + $0x204] sm:$0xf]
    %v865 = vld [vmem:[#allocation3 + $0x208] sm:$0xf]
    %v866 = vld [vmem:[#allocation3 + $0x20c] sm:$0xf]
    %v867 = vld [vmem:[#allocation3 + $0x210] sm:$0xf]
    %v868 = vld [vmem:[#allocation3 + $0x214] sm:$0xf]
    %v869 = vld [vmem:[#allocation3 + $0x218] sm:$0xf]
    %v870 = vld [vmem:[#allocation3 + $0x21c] sm:$0xf]
    %v871 = vld [vmem:[#allocation3 + $0x220] sm:$0xf]
    %v872 = vld [vmem:[#allocation3 + $0x224] sm:$0xf]
    %v873 = vld [vmem:[#allocation3 + $0x228] sm:$0xf]
    %v874 = vld [vmem:[#allocation3 + $0x22c] sm:$0xf]
    %v875 = vld [vmem:[#allocation3 + $0x230] sm:$0xf]
    %v876 = vld [vmem:[#allocation3 + $0x234] sm:$0xf]
    %v877 = vld [vmem:[#allocation3 + $0x238] sm:$0xf]
    %v878 = vld [vmem:[#allocation3 + $0x23c] sm:$0xf]
    %v879 = vld [vmem:[#allocation3 + $0x240] sm:$0xf]
    %v880 = vld [vmem:[#allocation3 + $0x244] sm:$0xf]
    %v881 = vld [vmem:[#allocation3 + $0x248] sm:$0xf]
    %v882 = vld [vmem:[#allocation3 + $0x24c] sm:$0xf]
    %v883 = vld [vmem:[#allocation3 + $0x250] sm:$0xf]
    %v884 = vld [vmem:[#allocation3 + $0x254] sm:$0xf]
    %v885 = vld [vmem:[#allocation3 + $0x258] sm:$0xf]
    %v886 = vld [vmem:[#allocation3 + $0x25c] sm:$0xf]
    %v887 = vld [vmem:[#allocation3 + $0x260] sm:$0xf]
    %v888 = vld [vmem:[#allocation3 + $0x264] sm:$0xf]
    %v889 = vld [vmem:[#allocation3 + $0x268] sm:$0xf]
    %v890 = vld [vmem:[#allocation3 + $0x26c] sm:$0xf]
    %v891 = vld [vmem:[#allocation3 + $0x270] sm:$0xf]
    %v892 = vld [vmem:[#allocation3 + $0x274] sm:$0xf]
    %v893 = vld [vmem:[#allocation3 + $0x278] sm:$0xf]
    %v894 = vld [vmem:[#allocation3 + $0x27c] sm:$0xf]
    %v895 = vld [vmem:[%s4 + $0xb] sm:$0x1]
    %v896 = vlaneseq
    %v897 = vshrl.u32 %v896, 7
    %v898 = vsub.s32 0, %v897
    %v899 = vrot.slane %v895, %v898
    %v932 = vunpack.c.l.b16 %v863
    %v933 = vunpack.c.l.b16 %v864
    %v934 = vunpack.c.l.b16 %v865
    %v935 = vunpack.c.l.b16 %v866
    %v936 = vunpack.c.l.b16 %v867
    %v937 = vunpack.c.l.b16 %v868
    %v938 = vunpack.c.l.b16 %v869
    %v939 = vunpack.c.l.b16 %v870
    %v940 = vunpack.c.l.b16 %v871
    %v941 = vunpack.c.l.b16 %v872
    %v942 = vunpack.c.l.b16 %v873
    %v943 = vunpack.c.l.b16 %v874
    %v944 = vunpack.c.l.b16 %v875
    %v945 = vunpack.c.l.b16 %v876
    %v946 = vunpack.c.l.b16 %v877
    %v947 = vunpack.c.l.b16 %v878
    %v948 = vunpack.c.l.b16 %v879
    %v949 = vunpack.c.l.b16 %v880
    %v950 = vunpack.c.l.b16 %v881
    %v951 = vunpack.c.l.b16 %v882
    %v952 = vunpack.c.l.b16 %v883
    %v953 = vunpack.c.l.b16 %v884
    %v954 = vunpack.c.l.b16 %v885
    %v955 = vunpack.c.l.b16 %v886
    %v956 = vunpack.c.l.b16 %v887
    %v957 = vunpack.c.l.b16 %v888
    %v958 = vunpack.c.l.b16 %v889
    %v959 = vunpack.c.l.b16 %v890
    %v960 = vunpack.c.l.b16 %v891
    %v961 = vunpack.c.l.b16 %v892
    %v962 = vunpack.c.l.b16 %v893
    %v963 = vunpack.c.l.b16 %v894
    %v964 = vpack.c.b16 %v933, %v932
    %v965 = vpack.c.b16 %v935, %v934
    %v966 = vpack.c.b16 %v937, %v936
    %v967 = vpack.c.b16 %v939, %v938
    %v968 = vpack.c.b16 %v941, %v940
    %v969 = vpack.c.b16 %v943, %v942
    %v970 = vpack.c.b16 %v945, %v944
    %v971 = vpack.c.b16 %v947, %v946
    %v972 = vpack.c.b16 %v949, %v948
    %v973 = vpack.c.b16 %v951, %v950
    %v974 = vpack.c.b16 %v953, %v952
    %v975 = vpack.c.b16 %v955, %v954
    %v976 = vpack.c.b16 %v957, %v956
    %v977 = vpack.c.b16 %v959, %v958
    %v978 = vpack.c.b16 %v961, %v960
    %v979 = vpack.c.b16 %v963, %v962
    %996 = vmatprep.subr.bf16.mxu0 0
    %997 = vmatpush1.bf16.msra.mxu0 %v964
    %998 = vmatprep.subr.bf16.mxu0 0
    %999 = vmatpush1.bf16.msra.mxu0 %v965
    %1000 = vmatprep.subr.bf16.mxu0 0
    %1001 = vmatpush1.bf16.msra.mxu0 %v966
    %1002 = vmatprep.subr.bf16.mxu0 0
    %1003 = vmatpush1.bf16.msra.mxu0 %v967
    %1004 = vmatprep.subr.bf16.mxu0 0
    %1005 = vmatpush1.bf16.msra.mxu0 %v968
    %1006 = vmatprep.subr.bf16.mxu0 0
    %1007 = vmatpush1.bf16.msra.mxu0 %v969
    %1008 = vmatprep.subr.bf16.mxu0 0
    %1009 = vmatpush1.bf16.msra.mxu0 %v970
    %1010 = vmatprep.subr.bf16.mxu0 0
    %1011 = vmatpush1.bf16.msra.mxu0 %v971
    %1012 = vmatprep.subr.bf16.mxu0 0
    %1013 = vmatpush1.bf16.msra.mxu0 %v972
    %1014 = vmatprep.subr.bf16.mxu0 0
    %1015 = vmatpush1.bf16.msra.mxu0 %v973
    %1016 = vmatprep.subr.bf16.mxu0 0
    %1017 = vmatpush1.bf16.msra.mxu0 %v974
    %1018 = vmatprep.subr.bf16.mxu0 0
    %1019 = vmatpush1.bf16.msra.mxu0 %v975
    %1020 = vmatprep.subr.bf16.mxu0 0
    %1021 = vmatpush1.bf16.msra.mxu0 %v976
    %1022 = vmatprep.subr.bf16.mxu0 0
    %1023 = vmatpush1.bf16.msra.mxu0 %v977
    %1024 = vmatprep.subr.bf16.mxu0 0
    %1025 = vmatpush1.bf16.msra.mxu0 %v978
    %1026 = vmatprep.subr.bf16.mxu0 0
    %1027 = vmatpush1.bf16.msra.mxu0 %v979
    %1028 = vmatprep.mubr.bf16.mxu0 %v862
    %1029 = vmatmul.mubr.bf16.gmra.mrb[0].mxu0 %v543
    %v1030 = vpop.f32.mrb[0].mxu0
    %v1031 = vadd.f32 %v899, %v1030
    %v1032 = vpop.f32.mrb[0].mxu0
    %v1033 = vpop.f32.mrb[0].mxu0
    %v1034 = vadd.f32 %v899, %v1033
    %v1035 = vpop.f32.mrb[0].mxu0
    %1036 = vdwg.mxu0
    %v1037 = vld [vmem:[%s1] sm:$0xf]
    %v1038 = vld [vmem:[%s1 + $0x4] sm:$0xf]
    %v1039 = vld [vmem:[#allocation3] sm:$0xf]
    %v1040 = vld [vmem:[#allocation3 + $0x4] sm:$0xf]
    %v1041 = vld [vmem:[#allocation3 + $0x8] sm:$0xf]
    %v1042 = vld [vmem:[#allocation3 + $0xc] sm:$0xf]
    %v1043 = vld [vmem:[#allocation3 + $0x10] sm:$0xf]
    %v1044 = vld [vmem:[#allocation3 + $0x14] sm:$0xf]
    %v1045 = vld [vmem:[#allocation3 + $0x18] sm:$0xf]
    %v1046 = vld [vmem:[#allocation3 + $0x1c] sm:$0xf]
    %v1047 = vld [vmem:[#allocation3 + $0x20] sm:$0xf]
    %v1048 = vld [vmem:[#allocation3 + $0x24] sm:$0xf]
    %v1049 = vld [vmem:[#allocation3 + $0x28] sm:$0xf]
    %v1050 = vld [vmem:[#allocation3 + $0x2c] sm:$0xf]
    %v1051 = vld [vmem:[#allocation3 + $0x30] sm:$0xf]
    %v1052 = vld [vmem:[#allocation3 + $0x34] sm:$0xf]
    %v1053 = vld [vmem:[#allocation3 + $0x38] sm:$0xf]
    %v1054 = vld [vmem:[#allocation3 + $0x3c] sm:$0xf]
    %v1055 = vld [vmem:[%s4] sm:$0x1]
    %v1056 = vlaneseq
    %v1057 = vshrl.u32 %v1056, 7
    %v1058 = vsub.s32 0, %v1057
    %v1059 = vrot.slane %v1055, %v1058
    %v1062 = vunpack.c.l.b16 %v1037
    %v1063 = vunpack.c.l.b16 %v1038
    %v1064 = vpack.c.b16 %v1063, %v1062
    %v1082 = vunpack.c.l.b16 %v1039
    %v1083 = vunpack.c.l.b16 %v1040
    %v1084 = vunpack.c.l.b16 %v1041
    %v1085 = vunpack.c.l.b16 %v1042
    %v1086 = vunpack.c.l.b16 %v1043
    %v1087 = vunpack.c.l.b16 %v1044
    %v1088 = vunpack.c.l.b16 %v1045
    %v1089 = vunpack.c.l.b16 %v1046
    %v1090 = vunpack.c.l.b16 %v1047
    %v1091 = vunpack.c.l.b16 %v1048
    %v1092 = vunpack.c.l.b16 %v1049
    %v1093 = vunpack.c.l.b16 %v1050
    %v1094 = vunpack.c.l.b16 %v1051
    %v1095 = vunpack.c.l.b16 %v1052
    %v1096 = vunpack.c.l.b16 %v1053
    %v1097 = vunpack.c.l.b16 %v1054
    %v1098 = vpack.c.b16 %v1083, %v1082
    %v1099 = vpack.c.b16 %v1085, %v1084
    %v1100 = vpack.c.b16 %v1087, %v1086
    %v1101 = vpack.c.b16 %v1089, %v1088
    %v1102 = vpack.c.b16 %v1091, %v1090
    %v1103 = vpack.c.b16 %v1093, %v1092
    %v1104 = vpack.c.b16 %v1095, %v1094
    %v1105 = vpack.c.b16 %v1097, %v1096
    %1114 = vmatprep.subr.bf16.mxu0 0
    %1115 = vmatpush1.bf16.msra.mxu0 %v1098
    %1116 = vmatprep.subr.bf16.mxu0 0
    %1117 = vmatpush1.bf16.msra.mxu0 %v1099
    %1118 = vmatprep.subr.bf16.mxu0 0
    %1119 = vmatpush1.bf16.msra.mxu0 %v1100
    %1120 = vmatprep.subr.bf16.mxu0 0
    %1121 = vmatpush1.bf16.msra.mxu0 %v1101
    %1122 = vmatprep.subr.bf16.mxu0 0
    %1123 = vmatpush1.bf16.msra.mxu0 %v1102
    %1124 = vmatprep.subr.bf16.mxu0 0
    %1125 = vmatpush1.bf16.msra.mxu0 %v1103
    %1126 = vmatprep.subr.bf16.mxu0 0
    %1127 = vmatpush1.bf16.msra.mxu0 %v1104
    %1128 = vmatprep.subr.bf16.mxu0 0
    %1129 = vmatpush1.bf16.msra.mxu0 %v1105
    %1130 = vmatprep.subr.bf16.mxu0 0
    %1131 = vmatpush1.bf16.msra.mxu0 0
    %1132 = vmatprep.subr.bf16.mxu0 0
    %1133 = vmatpush1.bf16.msra.mxu0 0
    %1134 = vmatprep.subr.bf16.mxu0 0
    %1135 = vmatpush1.bf16.msra.mxu0 0
    %1136 = vmatprep.subr.bf16.mxu0 0
    %1137 = vmatpush1.bf16.msra.mxu0 0
    %1138 = vmatprep.subr.bf16.mxu0 0
    %1139 = vmatpush1.bf16.msra.mxu0 0
    %1140 = vmatprep.subr.bf16.mxu0 0
    %1141 = vmatpush1.bf16.msra.mxu0 0
    %1142 = vmatprep.subr.bf16.mxu0 0
    %1143 = vmatpush1.bf16.msra.mxu0 0
    %1144 = vmatprep.subr.bf16.mxu0 0
    %1145 = vmatpush1.bf16.msra.mxu0 0
    %1146 = vmatprep.mubr.bf16.mxu0 0
    %1147 = vmatmul.mubr.bf16.gmra.mrb[0].mxu0 %v1064
    %v1148 = vpop.f32.mrb[0].mxu0
    %v1149 = vadd.f32 %v1059, %v1148
    %v1150 = vpop.f32.mrb[0].mxu0
    %v1151 = vpop.f32.mrb[0].mxu0
    %v1152 = vadd.f32 %v1059, %v1151
    %v1153 = vpop.f32.mrb[0].mxu0
    %1154 = vdwg.mxu0
    %v1155 = vadd.f32 %v1149, %v1152
    %v1156 = vrot.slane %v1155, 4
    %v1157 = vadd.f32 %v1155, %v1156
    %v1158 = vrot.slane %v1157, 2
    %v1159 = vadd.f32 %v1157, %v1158
    %v1160 = vrot.slane %v1159, 1
    %v1161 = vadd.f32 %v1159, %v1160
    %v1162 = vrcp.pop 16.0
    %v1163 = vmul.f32 %v1161, %v1162
    %v1164 = vsub.f32 %v1149, %v1163
    %v1165 = vsub.f32 %v1152, %v1163
    %v1166 = vmul.f32 %v1164, %v1164
    %v1167 = vmul.f32 %v1165, %v1165
    %v1168 = vadd.f32 %v1166, %v1167
    %v1169 = vrot.slane %v1168, 4
    %v1170 = vadd.f32 %v1168, %v1169
    %v1171 = vrot.slane %v1170, 2
    %v1172 = vadd.f32 %v1170, %v1171
    %v1173 = vrot.slane %v1172, 1
    %v1174 = vadd.f32 %v1172, %v1173
    %v1175 = vmul.f32 %v1174, %v1162
    %v1176 = vadd.f32 %v1175, 1e-05
    %v1177 = vrsqrt.pop %v1176
    %v1178 = vmul.f32 %v1164, %v1177
    %v1179 = vmul.f32 %v1165, %v1177
    %v1180 = vld [vmem:[%s4 + $0x1] sm:$0x1]
    %v1181 = vlaneseq
    %v1182 = vshrl.u32 %v1181, 7
    %v1183 = vsub.s32 0, %v1182
    %v1184 = vrot.slane %v1180, %v1183
    %v1185 = vmul.f32 %v1178, %v1184
    %v1186 = vmul.f32 %v1179, %v1184
    %v1187 = vld [vmem:[%s4 + $0x2] sm:$0x1]
    %v1188 = vlaneseq
    %v1189 = vshrl.u32 %v1188, 7
    %v1190 = vsub.s32 0, %v1189
    %v1191 = vrot.slane %v1187, %v1190
    %v1192 = vadd.f32 %v1185, %v1191
    %v1193 = vadd.f32 %v1186, %v1191
    %v1194 = vmax.f32 %v1192, 0.0
    %v1195 = vmax.f32 %v1193, 0.0
    %v1196 = vpack.c.bf16 %v1195, %v1194
    %v1197 = vld [vmem:[#allocation3 + $0x40] sm:$0xf]
    %v1198 = vld [vmem:[#allocation3 + $0x44] sm:$0xf]
    %v1199 = vld [vmem:[#allocation3 + $0x48] sm:$0xf]
    %v1200 = vld [vmem:[#allocation3 + $0x4c] sm:$0xf]
    %v1201 = vld [vmem:[#allocation3 + $0x50] sm:$0xf]
    %v1202 = vld [vmem:[#allocation3 + $0x54] sm:$0xf]
    %v1203 = vld [vmem:[#allocation3 + $0x58] sm:$0xf]
    %v1204 = vld [vmem:[#allocation3 + $0x5c] sm:$0xf]
    %v1205 = vld [vmem:[#allocation3 + $0x60] sm:$0xf]
    %v1206 = vld [vmem:[#allocation3 + $0x64] sm:$0xf]
    %v1207 = vld [vmem:[#allocation3 + $0x68] sm:$0xf]
    %v1208 = vld [vmem:[#allocation3 + $0x6c] sm:$0xf]
    %v1209 = vld [vmem:[#allocation3 + $0x70] sm:$0xf]
    %v1210 = vld [vmem:[#allocation3 + $0x74] sm:$0xf]
    %v1211 = vld [vmem:[#allocation3 + $0x78] sm:$0xf]
    %v1212 = vld [vmem:[#allocation3 + $0x7c] sm:$0xf]
    %v1213 = vld [vmem:[%s4 + $0x3] sm:$0x1]
    %v1214 = vlaneseq
    %v1215 = vshrl.u32 %v1214, 7
    %v1216 = vsub.s32 0, %v1215
    %v1217 = vrot.slane %v1213, %v1216
    %v1234 = vunpack.c.l.b16 %v1197
    %v1235 = vunpack.c.l.b16 %v1198
    %v1236 = vunpack.c.l.b16 %v1199
    %v1237 = vunpack.c.l.b16 %v1200
    %v1238 = vunpack.c.l.b16 %v1201
    %v1239 = vunpack.c.l.b16 %v1202
    %v1240 = vunpack.c.l.b16 %v1203
    %v1241 = vunpack.c.l.b16 %v1204
    %v1242 = vunpack.c.l.b16 %v1205
    %v1243 = vunpack.c.l.b16 %v1206
    %v1244 = vunpack.c.l.b16 %v1207
    %v1245 = vunpack.c.l.b16 %v1208
    %v1246 = vunpack.c.l.b16 %v1209
    %v1247 = vunpack.c.l.b16 %v1210
    %v1248 = vunpack.c.l.b16 %v1211
    %v1249 = vunpack.c.l.b16 %v1212
    %v1250 = vpack.c.b16 %v1235, %v1234
    %v1251 = vpack.c.b16 %v1237, %v1236
    %v1252 = vpack.c.b16 %v1239, %v1238
    %v1253 = vpack.c.b16 %v1241, %v1240
    %v1254 = vpack.c.b16 %v1243, %v1242
    %v1255 = vpack.c.b16 %v1245, %v1244
    %v1256 = vpack.c.b16 %v1247, %v1246
    %v1257 = vpack.c.b16 %v1249, %v1248
    %1266 = vmatprep.subr.bf16.mxu0 0
    %1267 = vmatpush1.bf16.msra.mxu0 %v1250
    %1268 = vmatprep.subr.bf16.mxu0 0
    %1269 = vmatpush1.bf16.msra.mxu0 %v1251
    %1270 = vmatprep.subr.bf16.mxu0 0
    %1271 = vmatpush1.bf16.msra.mxu0 %v1252
    %1272 = vmatprep.subr.bf16.mxu0 0
    %1273 = vmatpush1.bf16.msra.mxu0 %v1253
    %1274 = vmatprep.subr.bf16.mxu0 0
    %1275 = vmatpush1.bf16.msra.mxu0 %v1254
    %1276 = vmatprep.subr.bf16.mxu0 0
    %1277 = vmatpush1.bf16.msra.mxu0 %v1255
    %1278 = vmatprep.subr.bf16.mxu0 0
    %1279 = vmatpush1.bf16.msra.mxu0 %v1256
    %1280 = vmatprep.subr.bf16.mxu0 0
    %1281 = vmatpush1.bf16.msra.mxu0 %v1257
    %1282 = vmatprep.subr.bf16.mxu0 0
    %1283 = vmatpush1.bf16.msra.mxu0 0
    %1284 = vmatprep.subr.bf16.mxu0 0
    %1285 = vmatpush1.bf16.msra.mxu0 0
    %1286 = vmatprep.subr.bf16.mxu0 0
    %1287 = vmatpush1.bf16.msra.mxu0 0
    %1288 = vmatprep.subr.bf16.mxu0 0
    %1289 = vmatpush1.bf16.msra.mxu0 0
    %1290 = vmatprep.subr.bf16.mxu0 0
    %1291 = vmatpush1.bf16.msra.mxu0 0
    %1292 = vmatprep.subr.bf16.mxu0 0
    %1293 = vmatpush1.bf16.msra.mxu0 0
    %1294 = vmatprep.subr.bf16.mxu0 0
    %1295 = vmatpush1.bf16.msra.mxu0 0
    %1296 = vmatprep.subr.bf16.mxu0 0
    %1297 = vmatpush1.bf16.msra.mxu0 0
    %1298 = vmatprep.mubr.bf16.mxu0 0
    %1299 = vmatmul.mubr.bf16.gmra.mrb[0].mxu0 %v1196
    %v1300 = vpop.f32.mrb[0].mxu0
    %v1301 = vadd.f32 %v1217, %v1300
    %v1302 = vpop.f32.mrb[0].mxu0
    %v1303 = vpop.f32.mrb[0].mxu0
    %v1304 = vadd.f32 %v1217, %v1303
    %v1305 = vpop.f32.mrb[0].mxu0
    %1306 = vdwg.mxu0
    %v1307 = vmul.f32 %v1301, 0.5
    %v1308 = vmul.f32 %v1304, 0.5
    %v1309 = vmul.f32 %v1031, 0.5
    %v1310 = vmul.f32 %v1034, 0.5
    %v1311 = vadd.f32 %v1307, %v1309
    %v1312 = vadd.f32 %v1308, %v1310
    %v1313 = vpack.c.bf16 %v1312, %v1311
    %v1314 = vld [vmem:[#allocation3 + $0x80] sm:$0xf]
    %v1315 = vld [vmem:[#allocation3 + $0x84] sm:$0xf]
    %v1316 = vld [vmem:[#allocation3 + $0x88] sm:$0xf]
    %v1317 = vld [vmem:[#allocation3 + $0x8c] sm:$0xf]
    %v1318 = vld [vmem:[#allocation3 + $0x90] sm:$0xf]
    %v1319 = vld [vmem:[#allocation3 + $0x94] sm:$0xf]
    %v1320 = vld [vmem:[#allocation3 + $0x98] sm:$0xf]
    %v1321 = vld [vmem:[#allocation3 + $0x9c] sm:$0xf]
    %v1322 = vld [vmem:[#allocation3 + $0xa0] sm:$0xf]
    %v1323 = vld [vmem:[#allocation3 + $0xa4] sm:$0xf]
    %v1324 = vld [vmem:[#allocation3 + $0xa8] sm:$0xf]
    %v1325 = vld [vmem:[#allocation3 + $0xac] sm:$0xf]
    %v1326 = vld [vmem:[#allocation3 + $0xb0] sm:$0xf]
    %v1327 = vld [vmem:[#allocation3 + $0xb4] sm:$0xf]
    %v1328 = vld [vmem:[#allocation3 + $0xb8] sm:$0xf]
    %v1329 = vld [vmem:[#allocation3 + $0xbc] sm:$0xf]
    %v1330 = vld [vmem:[%s4 + $0x4] sm:$0x1]
    %v1331 = vlaneseq
    %v1332 = vshrl.u32 %v1331, 7
    %v1333 = vsub.s32 0, %v1332
    %v1334 = vrot.slane %v1330, %v1333
    %v1351 = vunpack.c.l.b16 %v1314
    %v1352 = vunpack.c.l.b16 %v1315
    %v1353 = vunpack.c.l.b16 %v1316
    %v1354 = vunpack.c.l.b16 %v1317
    %v1355 = vunpack.c.l.b16 %v1318
    %v1356 = vunpack.c.l.b16 %v1319
    %v1357 = vunpack.c.l.b16 %v1320
    %v1358 = vunpack.c.l.b16 %v1321
    %v1359 = vunpack.c.l.b16 %v1322
    %v1360 = vunpack.c.l.b16 %v1323
    %v1361 = vunpack.c.l.b16 %v1324
    %v1362 = vunpack.c.l.b16 %v1325
    %v1363 = vunpack.c.l.b16 %v1326
    %v1364 = vunpack.c.l.b16 %v1327
    %v1365 = vunpack.c.l.b16 %v1328
    %v1366 = vunpack.c.l.b16 %v1329
    %v1367 = vpack.c.b16 %v1352, %v1351
    %v1368 = vpack.c.b16 %v1354, %v1353
    %v1369 = vpack.c.b16 %v1356, %v1355
    %v1370 = vpack.c.b16 %v1358, %v1357
    %v1371 = vpack.c.b16 %v1360, %v1359
    %v1372 = vpack.c.b16 %v1362, %v1361
    %v1373 = vpack.c.b16 %v1364, %v1363
    %v1374 = vpack.c.b16 %v1366, %v1365
    %1383 = vmatprep.subr.bf16.mxu0 0
    %1384 = vmatpush1.bf16.msra.mxu0 %v1367
    %1385 = vmatprep.subr.bf16.mxu0 0
    %1386 = vmatpush1.bf16.msra.mxu0 %v1368
    %1387 = vmatprep.subr.bf16.mxu0 0
    %1388 = vmatpush1.bf16.msra.mxu0 %v1369
    %1389 = vmatprep.subr.bf16.mxu0 0
    %1390 = vmatpush1.bf16.msra.mxu0 %v1370
    %1391 = vmatprep.subr.bf16.mxu0 0
    %1392 = vmatpush1.bf16.msra.mxu0 %v1371
    %1393 = vmatprep.subr.bf16.mxu0 0
    %1394 = vmatpush1.bf16.msra.mxu0 %v1372
    %1395 = vmatprep.subr.bf16.mxu0 0
    %1396 = vmatpush1.bf16.msra.mxu0 %v1373
    %1397 = vmatprep.subr.bf16.mxu0 0
    %1398 = vmatpush1.bf16.msra.mxu0 %v1374
    %1399 = vmatprep.subr.bf16.mxu0 0
    %1400 = vmatpush1.bf16.msra.mxu0 0
    %1401 = vmatprep.subr.bf16.mxu0 0
    %1402 = vmatpush1.bf16.msra.mxu0 0
    %1403 = vmatprep.subr.bf16.mxu0 0
    %1404 = vmatpush1.bf16.msra.mxu0 0
    %1405 = vmatprep.subr.bf16.mxu0 0
    %1406 = vmatpush1.bf16.msra.mxu0 0
    %1407 = vmatprep.subr.bf16.mxu0 0
    %1408 = vmatpush1.bf16.msra.mxu0 0
    %1409 = vmatprep.subr.bf16.mxu0 0
    %1410 = vmatpush1.bf16.msra.mxu0 0
    %1411 = vmatprep.subr.bf16.mxu0 0
    %1412 = vmatpush1.bf16.msra.mxu0 0
    %1413 = vmatprep.subr.bf16.mxu0 0
    %1414 = vmatpush1.bf16.msra.mxu0 0
    %1415 = vmatprep.mubr.bf16.mxu0 0
    %1416 = vmatmul.mubr.bf16.gmra.mrb[0].mxu0 %v1313
    %v1417 = vpop.f32.mrb[0].mxu0
    %v1418 = vadd.f32 %v1334, %v1417
    %v1419 = vpop.f32.mrb[0].mxu0
    %v1420 = vpop.f32.mrb[0].mxu0
    %v1421 = vadd.f32 %v1334, %v1420
    %v1422 = vpop.f32.mrb[0].mxu0
    %1423 = vdwg.mxu0
    %v1424 = vadd.f32 %v1418, %v1421
    %v1425 = vrot.slane %v1424, 4
    %v1426 = vadd.f32 %v1424, %v1425
    %v1427 = vrot.slane %v1426, 2
    %v1428 = vadd.f32 %v1426, %v1427
    %v1429 = vrot.slane %v1428, 1
    %v1430 = vadd.f32 %v1428, %v1429
    %v1431 = vmul.f32 %v1430, %v1162
    %v1432 = vsub.f32 %v1418, %v1431
    %v1433 = vsub.f32 %v1421, %v1431
    %v1434 = vmul.f32 %v1432, %v1432
    %v1435 = vmul.f32 %v1433, %v1433
    %v1436 = vadd.f32 %v1434, %v1435
    %v1437 = vrot.slane %v1436, 4
    %v1438 = vadd.f32 %v1436, %v1437
    %v1439 = vrot.slane %v1438, 2
    %v1440 = vadd.f32 %v1438, %v1439
    %v1441 = vrot.slane %v1440, 1
    %v1442 = vadd.f32 %v1440, %v1441
    %v1443 = vmul.f32 %v1442, %v1162
    %v1444 = vadd.f32 %v1443, 1e-05
    %v1445 = vrsqrt.pop %v1444
    %v1446 = vmul.f32 %v1432, %v1445
    %v1447 = vmul.f32 %v1433, %v1445
    %v1448 = vld [vmem:[%s4 + $0x5] sm:$0x1]
    %v1449 = vlaneseq
    %v1450 = vshrl.u32 %v1449, 7
    %v1451 = vsub.s32 0, %v1450
    %v1452 = vrot.slane %v1448, %v1451
    %v1453 = vmul.f32 %v1446, %v1452
    %v1454 = vmul.f32 %v1447, %v1452
    %v1455 = vld [vmem:[%s4 + $0x6] sm:$0x1]
    %v1456 = vlaneseq
    %v1457 = vshrl.u32 %v1456, 7
    %v1458 = vsub.s32 0, %v1457
    %v1459 = vrot.slane %v1455, %v1458
    %v1460 = vadd.f32 %v1453, %v1459
    %v1461 = vadd.f32 %v1454, %v1459
    %v1462 = vmax.f32 %v1460, 0.0
    %v1463 = vmax.f32 %v1461, 0.0
    %v1464 = vpack.c.bf16 %v1463, %v1462
    %v1465 = vld [vmem:[#allocation3 + $0xc0] sm:$0xf]
    %v1466 = vld [vmem:[#allocation3 + $0xc4] sm:$0xf]
    %v1467 = vld [vmem:[#allocation3 + $0xc8] sm:$0xf]
    %v1468 = vld [vmem:[#allocation3 + $0xcc] sm:$0xf]
    %v1469 = vld [vmem:[#allocation3 + $0xd0] sm:$0xf]
    %v1470 = vld [vmem:[#allocation3 + $0xd4] sm:$0xf]
    %v1471 = vld [vmem:[#allocation3 + $0xd8] sm:$0xf]
    %v1472 = vld [vmem:[#allocation3 + $0xdc] sm:$0xf]
    %v1473 = vld [vmem:[#allocation3 + $0xe0] sm:$0xf]
    %v1474 = vld [vmem:[#allocation3 + $0xe4] sm:$0xf]
    %v1475 = vld [vmem:[#allocation3 + $0xe8] sm:$0xf]
    %v1476 = vld [vmem:[#allocation3 + $0xec] sm:$0xf]
    %v1477 = vld [vmem:[#allocation3 + $0xf0] sm:$0xf]
    %v1478 = vld [vmem:[#allocation3 + $0xf4] sm:$0xf]
    %v1479 = vld [vmem:[#allocation3 + $0xf8] sm:$0xf]
    %v1480 = vld [vmem:[#allocation3 + $0xfc] sm:$0xf]
    %v1481 = vld [vmem:[%s4 + $0x7] sm:$0x1]
    %v1482 = vlaneseq
    %v1483 = vshrl.u32 %v1482, 7
    %v1484 = vsub.s32 0, %v1483
    %v1485 = vrot.slane %v1481, %v1484
    %v1502 = vunpack.c.l.b16 %v1465
    %v1503 = vunpack.c.l.b16 %v1466
    %v1504 = vunpack.c.l.b16 %v1467
    %v1505 = vunpack.c.l.b16 %v1468
    %v1506 = vunpack.c.l.b16 %v1469
    %v1507 = vunpack.c.l.b16 %v1470
    %v1508 = vunpack.c.l.b16 %v1471
    %v1509 = vunpack.c.l.b16 %v1472
    %v1510 = vunpack.c.l.b16 %v1473
    %v1511 = vunpack.c.l.b16 %v1474
    %v1512 = vunpack.c.l.b16 %v1475
    %v1513 = vunpack.c.l.b16 %v1476
    %v1514 = vunpack.c.l.b16 %v1477
    %v1515 = vunpack.c.l.b16 %v1478
    %v1516 = vunpack.c.l.b16 %v1479
    %v1517 = vunpack.c.l.b16 %v1480
    %v1518 = vpack.c.b16 %v1503, %v1502
    %v1519 = vpack.c.b16 %v1505, %v1504
    %v1520 = vpack.c.b16 %v1507, %v1506
    %v1521 = vpack.c.b16 %v1509, %v1508
    %v1522 = vpack.c.b16 %v1511, %v1510
    %v1523 = vpack.c.b16 %v1513, %v1512
    %v1524 = vpack.c.b16 %v1515, %v1514
    %v1525 = vpack.c.b16 %v1517, %v1516
    %1534 = vmatprep.subr.bf16.mxu0 0
    %1535 = vmatpush1.bf16.msra.mxu0 %v1518
    %1536 = vmatprep.subr.bf16.mxu0 0
    %1537 = vmatpush1.bf16.msra.mxu0 %v1519
    %1538 = vmatprep.subr.bf16.mxu0 0
    %1539 = vmatpush1.bf16.msra.mxu0 %v1520
    %1540 = vmatprep.subr.bf16.mxu0 0
    %1541 = vmatpush1.bf16.msra.mxu0 %v1521
    %1542 = vmatprep.subr.bf16.mxu0 0
    %1543 = vmatpush1.bf16.msra.mxu0 %v1522
    %1544 = vmatprep.subr.bf16.mxu0 0
    %1545 = vmatpush1.bf16.msra.mxu0 %v1523
    %1546 = vmatprep.subr.bf16.mxu0 0
    %1547 = vmatpush1.bf16.msra.mxu0 %v1524
    %1548 = vmatprep.subr.bf16.mxu0 0
    %1549 = vmatpush1.bf16.msra.mxu0 %v1525
    %1550 = vmatprep.subr.bf16.mxu0 0
    %1551 = vmatpush1.bf16.msra.mxu0 0
    %1552 = vmatprep.subr.bf16.mxu0 0
    %1553 = vmatpush1.bf16.msra.mxu0 0
    %1554 = vmatprep.subr.bf16.mxu0 0
    %1555 = vmatpush1.bf16.msra.mxu0 0
    %1556 = vmatprep.subr.bf16.mxu0 0
    %1557 = vmatpush1.bf16.msra.mxu0 0
    %1558 = vmatprep.subr.bf16.mxu0 0
    %1559 = vmatpush1.bf16.msra.mxu0 0
    %1560 = vmatprep.subr.bf16.mxu0 0
    %1561 = vmatpush1.bf16.msra.mxu0 0
    %1562 = vmatprep.subr.bf16.mxu0 0
    %1563 = vmatpush1.bf16.msra.mxu0 0
    %1564 = vmatprep.subr.bf16.mxu0 0
    %1565 = vmatpush1.bf16.msra.mxu0 0
    %1566 = vmatprep.mubr.bf16.mxu0 0
    %1567 = vmatmul.mubr.bf16.gmra.mrb[0].mxu0 %v1464
    %v1568 = vpop.f32.mrb[0].mxu0
    %v1569 = vadd.f32 %v1485, %v1568
    %v1570 = vpop.f32.mrb[0].mxu0
    %v1571 = vpop.f32.mrb[0].mxu0
    %v1572 = vadd.f32 %v1485, %v1571
    %v1573 = vpop.f32.mrb[0].mxu0
    %1574 = vdwg.mxu0
    %v1575 = vxor.u32 %v1569, 2147483648
    %v1576 = vxor.u32 %v1572, 2147483648
    %v1577 = vmul.f32 %v1575, 1.442695
    %v1578 = vpow.pop %v1577
    %v1579 = vmul.f32 %v1576, 1.442695
    %v1580 = vpow.pop %v1579
    %v1581 = vadd.f32 %v1578, 1.0
    %v1582 = vadd.f32 %v1580, 1.0
    %v1583 = vrcp.pop %v1581
    %v1584 = vmul.f32 1.0, %v1583
    %v1585 = vrcp.pop %v1582
    %v1586 = vmul.f32 1.0, %v1585
    %1587 = vst [vmem:[%s5] sm:$0xff] %v1301
    %1588 = vst [vmem:[%s5 + $0x8] sm:$0xff] %v1304
    %1589 = vst [vmem:[%s6] sm:$0xff] %v1031
    %1590 = vst [vmem:[%s6 + $0x8] sm:$0xff] %v1034
    %1591 = vst [vmem:[%s7] sm:$0xff] %v1311
    %1592 = vst [vmem:[%s7 + $0x8] sm:$0xff] %v1312
    %1593 = vst [vmem:[#allocation6] sm:$0xff] %v1584
    %1594 = vst [vmem:[#allocation6 + $0x8] sm:$0xff] %v1586
    // Predicated region
    $region40: #{_lambda_.1} parent=1 // pred_check
      _
    $region41: #{_lambda_.1} parent=1 // pred_check_branch
      %1596 = sbr.rel (0) target = $region43
    $region42: #{_lambda_.1} parent=1 // pred_region
      _
    $region43: #{_lambda_.1} parent=1 // pred_fallthru
      _
    // Predicated region
    $region44: #{_lambda_.1} parent=1 // pred_check
      _
    $region45: #{_lambda_.1} parent=1 // pred_check_branch
      %1598 = sbr.rel (0) target = $region47
    $region46: #{_lambda_.1} parent=1 // pred_region
      _
    $region47: #{_lambda_.1} parent=1 // pred_fallthru
      _
    // Predicated region
    $region48: #{_lambda_.1} parent=1 // pred_check
      _
    $region49: #{_lambda_.1} parent=1 // pred_check_branch
      %1600 = sbr.rel (0) target = $region51
    $region50: #{_lambda_.1} parent=1 // pred_region
      _
    $region51: #{_lambda_.1} parent=1 // pred_fallthru
      _
    // Predicated region
    $region52: #{_lambda_.1} parent=1 // pred_check
      _
    $region53: #{_lambda_.1} parent=1 // pred_check_branch
      %1602 = sbr.rel (0) target = $region55
    $region54: #{_lambda_.1} parent=1 // pred_region
      %s1604 = ssub.s32 256, 256
      %1605 = vsyncadd [#allocation5], %s1604
      %s1606 = sshll.u32 [#allocation6], 4
      %s1607 = int_to_ptr.vmem [resolvable:$true] %s1606
      %1612 = dma.vmem_to_hbm [thread:$0]  %s1607, 256, %s8, [#allocation5], 128, 128, 8
    $region55: #{_lambda_.1} parent=1 // pred_fallthru
      _
    // Predicated region
    $region56: #{_lambda_.1} parent=1 // pred_check
      _
    $region57: #{_lambda_.1} parent=1 // pred_check_branch
      %1614 = sbr.rel (0) target = $region59
    $region58: #{_lambda_.1} parent=1 // pred_region
      _
    $region59: #{_lambda_.1} parent=1 // pred_fallthru
      _
    // Predicated region
    $region60: #{_lambda_.1} parent=1 // pred_check
      _
    $region61: #{_lambda_.1} parent=1 // pred_check_branch
      %1616 = sbr.rel (0) target = $region63
    $region62: #{_lambda_.1} parent=1 // pred_region
      _
    $region63: #{_lambda_.1} parent=1 // pred_fallthru
      _
    // Predicated region
    $region64: #{_lambda_.1} parent=1 // pred_check
      _
    $region65: #{_lambda_.1} parent=1 // pred_check_branch
      %1618 = sbr.rel (0) target = $region67
    $region66: #{_lambda_.1} parent=1 // pred_region
      _
    $region67: #{_lambda_.1} parent=1 // pred_fallthru
      _
    // Predicated region
    $region68: #{_lambda_.1} parent=1 // pred_check
      _
    $region69: #{_lambda_.1} parent=1 // pred_check_branch
      %1620 = sbr.rel (0) target = $region71
    $region70: #{_lambda_.1} parent=1 // pred_region
      %1621 = dma.done [#allocation5], 256
    $region71: #{_lambda_.1} parent=1 // pred_fallthru
      _
    %1622 = vsyncpa [#allocation4], 1
    %1623 = vsyncpa [#allocation5], 1

</llo_original>
